<compile_context>
chip_gen: v6e
topology: v6e:2x2x1
jax: 0.10.0
libtpu: 0.0.40
codegen_flags: <defaults>
</compile_context>

<pallas_src>
import jax
import jax.numpy as jnp
from jax import lax
from jax.experimental import pallas as pl
from jax.experimental.pallas import tpu as pltpu

EPS = 1e-3


def _round_up(a, b):
    return ((a + b - 1) // b) * b


def _pick_hw_tile(hw_pad, max_tile=2048):
    # hw_pad is a multiple of 128; pick the largest tile <= max_tile that divides it.
    if hw_pad <= max_tile:
        return hw_pad
    for t in (2048, 1024, 512, 256, 128):
        if t <= max_tile and hw_pad % t == 0:
            return t
    return 128


def conv_stats_kernel(x_ref, w_ref, y_ref, psum_ref, psumsq_ref):
    # x_ref: (1, Cin, T)  w_ref: (Cout, Cin)
    # y_ref: (1, Cout, T) psum_ref/psumsq_ref: (1, 1, Cout, 1)
    y = jnp.dot(w_ref[...], x_ref[0], preferred_element_type=jnp.float32)  # (Cout, T)
    y_ref[0] = y
    cout = y.shape[0]
    psum_ref[...] = jnp.sum(y, axis=1, keepdims=True).reshape(1, 1, cout, 1)
    psumsq_ref[...] = jnp.sum(y * y, axis=1, keepdims=True).reshape(1, 1, cout, 1)


def bn_apply_kernel(y_ref, scale_ref, shift_ref, o_ref):
    # y_ref: (1, Cout, T)  scale/shift: (Cout, 1)  o_ref: (1, Cout, T)
    o_ref[0] = y_ref[0] * scale_ref[...] + shift_ref[...]


@jax.jit
def conv1x1_batchnorm(x_nchw, weight_oihw, gamma, beta):
    """x_nchw: (N, Cin, H, W) f32; weight_oihw: (Cout, Cin, 1, 1); gamma/beta: (Cout,)"""
    n, cin, h, w = x_nchw.shape
    cout = weight_oihw.shape[0]
    hw = h * w
    hw_pad = _round_up(hw, 128)
    tile = _pick_hw_tile(hw_pad)
    g = hw_pad // tile

    x3 = x_nchw.reshape(n, cin, hw).astype(jnp.float32)
    if hw_pad != hw:
        x3 = jnp.pad(x3, ((0, 0), (0, 0), (0, hw_pad - hw)))  # zeros: no effect on stats
    w_mat = weight_oihw.reshape(cout, cin).astype(jnp.float32)

    # ---- Phase 1: conv-as-matmul + per-tile partial BN statistics ----
    y_pad, psum, psumsq = pl.pallas_call(
        conv_stats_kernel,
        out_shape=(
            jax.ShapeDtypeStruct((n, cout, hw_pad), jnp.float32),
            jax.ShapeDtypeStruct((n, g, cout, 1), jnp.float32),
            jax.ShapeDtypeStruct((n, g, cout, 1), jnp.float32),
        ),
        grid=(n, g),
        in_specs=[
            pl.BlockSpec((1, cin, tile), lambda i, j: (i, 0, j)),
            pl.BlockSpec((cout, cin), lambda i, j: (0, 0)),
        ],
        out_specs=(
            pl.BlockSpec((1, cout, tile), lambda i, j: (i, 0, j)),
            pl.BlockSpec((1, 1, cout, 1), lambda i, j: (i, j, 0, 0)),
            pl.BlockSpec((1, 1, cout, 1), lambda i, j: (i, j, 0, 0)),
        ),
        compiler_params=pltpu.CompilerParams(
            dimension_semantics=("parallel", "parallel")),
        cost_estimate=pl.CostEstimate(
            flops=2 * n * hw_pad * cin * cout,
            transcendentals=0,
            bytes_accessed=4 * (n * hw_pad * (cin + cout) + cin * cout),
        ),
    )(x3, w_mat)

    # ---- Tiny per-channel (64-wide) reduction + BN fold (plain XLA) ----
    m_total = jnp.float32(n * hw)  # real count; zero-padded columns contributed 0
    s = jnp.sum(psum, axis=(0, 1)).reshape(cout)
    ss = jnp.sum(psumsq, axis=(0, 1)).reshape(cout)
    mean = s / m_total
    var = ss / m_total - mean * mean            # biased variance (training-mode BN)
    inv_std = lax.rsqrt(var + EPS)
    gamma_f = gamma.astype(jnp.float32)
    beta_f = beta.astype(jnp.float32)
    scale = (gamma_f * inv_std).reshape(cout, 1)
    shift = (beta_f - mean * gamma_f * inv_std).reshape(cout, 1)

    # ---- Phase 2: lane-dense normalize: out = y * scale + shift ----
    out_pad = pl.pallas_call(
        bn_apply_kernel,
        out_shape=jax.ShapeDtypeStruct((n, cout, hw_pad), jnp.float32),
        grid=(n, g),
        in_specs=[
            pl.BlockSpec((1, cout, tile), lambda i, j: (i, 0, j)),
            pl.BlockSpec((cout, 1), lambda i, j: (0, 0)),
            pl.BlockSpec((cout, 1), lambda i, j: (0, 0)),
        ],
        out_specs=pl.BlockSpec((1, cout, tile), lambda i, j: (i, 0, j)),
        compiler_params=pltpu.CompilerParams(
            dimension_semantics=("parallel", "parallel")),
        cost_estimate=pl.CostEstimate(
            flops=2 * n * hw_pad * cout,
            transcendentals=0,
            bytes_accessed=4 * 2 * n * hw_pad * cout,
        ),
    )(y_pad, scale, shift)

    out = out_pad[:, :, :hw] if hw_pad != hw else out_pad
    return out.reshape(n, cout, h, w)


def reference(x_nchw, weight_oihw, gamma, beta):
    y = lax.conv_general_dilated(
        x_nchw, weight_oihw, window_strides=(1, 1), padding="VALID",
        dimension_numbers=("NCHW", "OIHW", "NCHW"))
    mean = jnp.mean(y, axis=(0, 2, 3), keepdims=True)
    var = jnp.mean((y - mean) ** 2, axis=(0, 2, 3), keepdims=True)
    g = gamma.reshape(1, -1, 1, 1)
    b = beta.reshape(1, -1, 1, 1)
    return (y - mean) * lax.rsqrt(var + EPS) * g + b


if __name__ == "__main__":
    key = jax.random.PRNGKey(0)
    k_x, k_w = jax.random.split(key)

    # Channels fixed by the layer defs (Cin=288, Cout=64); module spatial 25x25,
    # small batch=2 to exercise multi-tile stats accumulation.
    N, CIN, H, W = 2, 288, 25, 25
    COUT = 64

    x = jax.random.normal(k_x, (N, CIN, H, W), dtype=jnp.float32)
    weight = jax.random.normal(k_w, (COUT, CIN, 1, 1), dtype=jnp.float32) * 0.05
    gamma = jnp.linspace(0.5, 1.5, COUT, dtype=jnp.float32)
    beta = jnp.linspace(-0.2, 0.2, COUT, dtype=jnp.float32)

    out = jax.block_until_ready(conv1x1_batchnorm(x, weight, gamma, beta))
    ref = jax.block_until_ready(reference(x, weight, gamma, beta))

    assert out.shape == (N, COUT, H, W)
    assert jnp.allclose(out, ref, atol=1e-3, rtol=1e-3), float(jnp.max(jnp.abs(out - ref)))

    print("KERNEL_OK")
</pallas_src>

<mosaic_0001>
module attributes {stable_mosaic.version = 11 : i64} {
  func.func @conv_stats_kernel(%arg0: i32, %arg1: i32, %arg2: memref<1x288x640xf32, #tpu.memory_space<vmem>>, %arg3: memref<64x288xf32, #tpu.memory_space<vmem>>, %arg4: memref<1x64x640xf32, #tpu.memory_space<vmem>>, %arg5: memref<1x1x64x1xf32, #tpu.memory_space<vmem>>, %arg6: memref<1x1x64x1xf32, #tpu.memory_space<vmem>>) attributes {dimension_semantics = [#tpu.dimension_semantics<parallel>, #tpu.dimension_semantics<parallel>], iteration_bounds = array<i64: 2, 1>, scalar_prefetch = 0 : i64, scratch_operands = 0 : i64, tpu.core_type = #tpu.core_type<tc>, window_params = [{transform_indices = @transform_0, window_bounds = array<i64: 1, 288, 640>}, {pipeline_mode = #tpu.pipeline_mode<synchronous>, transform_indices = @transform_1, window_bounds = array<i64: 64, 288>}, {transform_indices = @transform_2, window_bounds = array<i64: 1, 64, 640>}, {transform_indices = @transform_3, window_bounds = array<i64: 1, 1, 64, 1>}, {transform_indices = @transform_4, window_bounds = array<i64: 1, 1, 64, 1>}]} {
    %c0 = arith.constant 0 : index
    %c0_0 = arith.constant 0 : index
    %0 = vector.load %arg3[%c0, %c0_0] : memref<64x288xf32, #tpu.memory_space<vmem>>, vector<64x288xf32>
    %c0_1 = arith.constant 0 : index
    %c0_2 = arith.constant 0 : index
    %c0_3 = arith.constant 0 : index
    %1 = vector.load %arg2[%c0_1, %c0_2, %c0_3] : memref<1x288x640xf32, #tpu.memory_space<vmem>>, vector<1x288x640xf32>
    %2 = vector.shape_cast %1 : vector<1x288x640xf32> to vector<288x640xf32>
    %cst = arith.constant dense<0.000000e+00> : vector<64x640xf32>
    %3 = tpu.matmul %0, %2, %cst {dimension_numbers = #tpu.dot_dimension_numbers<[1], [0], [0], [1], [0, 0, 1, 1], [], []>} : vector<64x288xf32>, vector<288x640xf32>, vector<64x640xf32> -> vector<64x640xf32>
    %c0_4 = arith.constant 0 : index
    %c0_5 = arith.constant 0 : index
    %c0_6 = arith.constant 0 : index
    %4 = vector.load %arg4[%c0_4, %c0_5, %c0_6] : memref<1x64x640xf32, #tpu.memory_space<vmem>>, vector<1x64x640xf32>
    %5 = vector.shape_cast %4 : vector<1x64x640xf32> to vector<64x640xf32>
    %6 = vector.shape_cast %3 : vector<64x640xf32> to vector<1x64x640xf32>
    tpu.vector_store %arg4[%c0_4, %c0_5, %c0_6], %6 {strides = array<i32>} : memref<1x64x640xf32, #tpu.memory_space<vmem>>, vector<1x64x640xf32>,
    %cst_7 = arith.constant dense<0.000000e+00> : vector<64xf32>
    %7 = vector.multi_reduction <add>, %3, %cst_7 [1] : vector<64x640xf32> to vector<64xf32>
    %8 = vector.shape_cast %7 : vector<64xf32> to vector<64x1xf32>
    %9 = vector.shape_cast %8 : vector<64x1xf32> to vector<1x1x64x1xf32>
    %c0_8 = arith.constant 0 : index
    %c0_9 = arith.constant 0 : index
    %c0_10 = arith.constant 0 : index
    %c0_11 = arith.constant 0 : index
    %10 = vector.load %arg5[%c0_8, %c0_9, %c0_10, %c0_11] : memref<1x1x64x1xf32, #tpu.memory_space<vmem>>, vector<1x1x64x1xf32>
    tpu.vector_store %arg5[%c0_8, %c0_9, %c0_10, %c0_11], %9 {strides = array<i32>} : memref<1x1x64x1xf32, #tpu.memory_space<vmem>>, vector<1x1x64x1xf32>,
    %11 = arith.mulf %3, %3 : vector<64x640xf32>
    %cst_12 = arith.constant dense<0.000000e+00> : vector<64xf32>
    %12 = vector.multi_reduction <add>, %11, %cst_12 [1] : vector<64x640xf32> to vector<64xf32>
    %13 = vector.shape_cast %12 : vector<64xf32> to vector<64x1xf32>
    %14 = vector.shape_cast %13 : vector<64x1xf32> to vector<1x1x64x1xf32>
    %c0_13 = arith.constant 0 : index
    %c0_14 = arith.constant 0 : index
    %c0_15 = arith.constant 0 : index
    %c0_16 = arith.constant 0 : index
    %15 = vector.load %arg6[%c0_13, %c0_14, %c0_15, %c0_16] : memref<1x1x64x1xf32, #tpu.memory_space<vmem>>, vector<1x1x64x1xf32>
    tpu.vector_store %arg6[%c0_13, %c0_14, %c0_15, %c0_16], %14 {strides = array<i32>} : memref<1x1x64x1xf32, #tpu.memory_space<vmem>>, vector<1x1x64x1xf32>,
    return
  }
  func.func @transform_0(%arg0: i32, %arg1: i32) -> (i32, i32, i32) {
    %c0_i32 = arith.constant 0 : i32
    %c0_i32_0 = arith.constant 0 : i32
    return %arg0, %c0_i32, %arg1 : i32, i32, i32
  }
  func.func @transform_1(%arg0: i32, %arg1: i32) -> (i32, i32) {
    %c0_i32 = arith.constant 0 : i32
    %c0_i32_0 = arith.constant 0 : i32
    %c0_i32_1 = arith.constant 0 : i32
    return %c0_i32, %c0_i32_0 : i32, i32
  }
  func.func @transform_2(%arg0: i32, %arg1: i32) -> (i32, i32, i32) {
    %c0_i32 = arith.constant 0 : i32
    %c0_i32_0 = arith.constant 0 : i32
    return %arg0, %c0_i32, %arg1 : i32, i32, i32
  }
  func.func @transform_3(%arg0: i32, %arg1: i32) -> (i32, i32, i32, i32) {
    %c0_i32 = arith.constant 0 : i32
    %c0_i32_0 = arith.constant 0 : i32
    %c0_i32_1 = arith.constant 0 : i32
    return %arg0, %arg1, %c0_i32, %c0_i32_0 : i32, i32, i32, i32
  }
  func.func @transform_4(%arg0: i32, %arg1: i32) -> (i32, i32, i32, i32) {
    %c0_i32 = arith.constant 0 : i32
    %c0_i32_0 = arith.constant 0 : i32
    %c0_i32_1 = arith.constant 0 : i32
    return %arg0, %arg1, %c0_i32, %c0_i32_0 : i32, i32, i32, i32
  }
}

module attributes {stable_mosaic.version = 11 : i64} {
  func.func @bn_apply_kernel(%arg0: i32, %arg1: i32, %arg2: memref<1x64x640xf32, #tpu.memory_space<vmem>>, %arg3: memref<64x1xf32, #tpu.memory_space<vmem>>, %arg4: memref<64x1xf32, #tpu.memory_space<vmem>>, %arg5: memref<1x64x640xf32, #tpu.memory_space<vmem>>) attributes {dimension_semantics = [#tpu.dimension_semantics<parallel>, #tpu.dimension_semantics<parallel>], iteration_bounds = array<i64: 2, 1>, scalar_prefetch = 0 : i64, scratch_operands = 0 : i64, tpu.core_type = #tpu.core_type<tc>, window_params = [{transform_indices = @transform_0, window_bounds = array<i64: 1, 64, 640>}, {pipeline_mode = #tpu.pipeline_mode<synchronous>, transform_indices = @transform_1, window_bounds = array<i64: 64, 1>}, {pipeline_mode = #tpu.pipeline_mode<synchronous>, transform_indices = @transform_2, window_bounds = array<i64: 64, 1>}, {transform_indices = @transform_3, window_bounds = array<i64: 1, 64, 640>}]} {
    %c0 = arith.constant 0 : index
    %c0_0 = arith.constant 0 : index
    %c0_1 = arith.constant 0 : index
    %0 = vector.load %arg2[%c0, %c0_0, %c0_1] : memref<1x64x640xf32, #tpu.memory_space<vmem>>, vector<1x64x640xf32>
    %1 = vector.shape_cast %0 : vector<1x64x640xf32> to vector<64x640xf32>
    %c0_2 = arith.constant 0 : index
    %c0_3 = arith.constant 0 : index
    %2 = vector.load %arg3[%c0_2, %c0_3] : memref<64x1xf32, #tpu.memory_space<vmem>>, vector<64x1xf32>
    %3 = vector.broadcast %2 : vector<64x1xf32> to vector<64x640xf32>
    %4 = arith.mulf %1, %3 : vector<64x640xf32>
    %c0_4 = arith.constant 0 : index
    %c0_5 = arith.constant 0 : index
    %5 = vector.load %arg4[%c0_4, %c0_5] : memref<64x1xf32, #tpu.memory_space<vmem>>, vector<64x1xf32>
    %6 = vector.broadcast %5 : vector<64x1xf32> to vector<64x640xf32>
    %7 = arith.addf %4, %6 : vector<64x640xf32>
    %c0_6 = arith.constant 0 : index
    %c0_7 = arith.constant 0 : index
    %c0_8 = arith.constant 0 : index
    %8 = vector.load %arg5[%c0_6, %c0_7, %c0_8] : memref<1x64x640xf32, #tpu.memory_space<vmem>>, vector<1x64x640xf32>
    %9 = vector.shape_cast %8 : vector<1x64x640xf32> to vector<64x640xf32>
    %10 = vector.shape_cast %7 : vector<64x640xf32> to vector<1x64x640xf32>
    tpu.vector_store %arg5[%c0_6, %c0_7, %c0_8], %10 {strides = array<i32>} : memref<1x64x640xf32, #tpu.memory_space<vmem>>, vector<1x64x640xf32>,
    return
  }
  func.func @transform_0(%arg0: i32, %arg1: i32) -> (i32, i32, i32) {
    %c0_i32 = arith.constant 0 : i32
    %c0_i32_0 = arith.constant 0 : i32
    return %arg0, %c0_i32, %arg1 : i32, i32, i32
  }
  func.func @transform_1(%arg0: i32, %arg1: i32) -> (i32, i32) {
    %c0_i32 = arith.constant 0 : i32
    %c0_i32_0 = arith.constant 0 : i32
    %c0_i32_1 = arith.constant 0 : i32
    return %c0_i32, %c0_i32_0 : i32, i32
  }
  func.func @transform_2(%arg0: i32, %arg1: i32) -> (i32, i32) {
    %c0_i32 = arith.constant 0 : i32
    %c0_i32_0 = arith.constant 0 : i32
    %c0_i32_1 = arith.constant 0 : i32
    return %c0_i32, %c0_i32_0 : i32, i32
  }
  func.func @transform_3(%arg0: i32, %arg1: i32) -> (i32, i32, i32) {
    %c0_i32 = arith.constant 0 : i32
    %c0_i32_0 = arith.constant 0 : i32
    return %arg0, %c0_i32, %arg1 : i32, i32, i32
  }
}

</mosaic_0001>

<llo_original>
// kernel: conv1x1_batchnorm.3
$region0: #{conv1x1_batchnorm.3}
  #allocation0 [shape = 'u32[]', space=smem, size = 0x4, offset = 0x4, fixed_abs, tag = 'smem constant byte address 0x4 - core index']
  #allocation1 [shape = 'u32[144,128]{1,0:T(1,128)}', space=vmem, size = 0x12000, scoped, tag = 'internal scratch']
  %s0 = inlined_call_operand.vmem [shape: f32[2,64,640], index: 0, kind: input, shape index: {}]
  %s1 = inlined_call_operand.vmem [shape: f32[64,1], index: 1, kind: input, shape index: {}]
  %s2 = inlined_call_operand.vmem [shape: f32[64,1], index: 2, kind: input, shape index: {}]
  %s3 = inlined_call_operand.vmem [shape: f32[2,64,640], index: 3, kind: output, shape index: {}]
  %s4 = sld [smem:[#allocation0]]
  $region45: #{conv1x1_batchnorm.3} parent=0
    _
  %s6 = ssub.s32 1, %s4
  %s7 = scalar_select 0, %s6, %s4
  loop: start=0, step=1, limit=4
  $region2: #{conv1x1_batchnorm.3} parent=0 // loop_pre_header
    _
  $region3: #{conv1x1_batchnorm.3} parent=0 // loop_header
    %s9 = sphi 0, %s13
    %p10 = scmp.ge.s32.totalorder %s9, 4
    %s16 = sphi 0, %s28
    %s17 = sphi 0, %s24
    %s18 = sphi 0, %s16
    %s19 = sphi 0, %s17
    %s20 = sphi 0, %s18
    %s21 = sphi 0, %s19
    %s33 = sphi 0, %s35
    %s36 = sphi 0, %s33
    %s37 = sphi 0, %s36
    %s53 = sphi 0, %s37
    %s57 = sphi 0, %s57
    %s59 = sphi 0, %s57
    %s60 = sphi 0, %s59
    %s74 = sphi 0, %s60
    %s78 = sphi 0, %s78
    %s80 = sphi 0, %s78
    %s81 = sphi 0, %s80
    %s95 = sphi 0, %s81
    %s103 = sphi 0, %s105
    %s106 = sphi 0, %s103
    %s107 = sphi 0, %s106
    %s123 = sphi 0, %s107
  $region4: #{conv1x1_batchnorm.3} parent=0 // loop_header_branch
    %12 = sbr.rel (%p10) target = $region8
  $region5: #{conv1x1_batchnorm.3} parent=0 // loop_body
    %s14 = ssub.s32 %s9, 1
    %s15 = ssub.s32 %s9, 2
    %s22 = sadd.s32 1, %s17
    %p23 = scmp.ge.s32.totalorder %s22, 1
    %s24 = scalar_select %p23, 0, %s22
    %s25 = sadd.s32 1, %s16
    %s26 = scalar_select %p23, %s25, %s16
    %p27 = scmp.ge.s32.totalorder %s26, 2
    %s28 = scalar_select %p27, 0, %s26
    %s29 = ssub.s32 %s16, %s28
    %s30 = ssub.s32 %s17, %s24
    %s31 = sor.u32 %s29, %s30
    %p32 = scmp.eq.s32.totalorder %s31, 0
    %s34 = sadd.s32 %s33, 1
    %s35 = scalar_select %p32, %s33, %s34
    %p38 = pneg %p32
    %p39 = scmp.eq.s32.totalorder %s9, 1
    %p40 = por %p38, %p39
    %p41 = scmp.ne.s32.totalorder %s33, %s36
    %p42 = scmp.eq.s32.totalorder %s9, 0
    %p43 = por %p41, %p42
    %p44 = scmp.ne.s32.totalorder %s33, %s36
    %p45 = scmp.eq.s32.totalorder %s14, 1
    %p46 = por %p44, %p45
    %p47 = scmp.ne.s32.totalorder %s36, %s37
    %p48 = scmp.eq.s32.totalorder %s14, 0
    %p49 = por %p47, %p48
    %p50 = scmp.ne.s32.totalorder %s36, %s37
    %p51 = scmp.eq.s32.totalorder %s15, 1
    %p52 = por %p50, %p51
    %p54 = scmp.ne.s32.totalorder %s37, %s53
    %p55 = scmp.eq.s32.totalorder %s15, 0
    %p56 = por %p54, %p55
    %s58 = sadd.s32 %s57, 1
    %p61 = scmp.eq.s32.totalorder %s9, 1
    %p62 = scmp.ne.s32.totalorder %s57, %s59
    %p63 = scmp.eq.s32.totalorder %s9, 0
    %p64 = por %p62, %p63
    %p65 = scmp.ne.s32.totalorder %s57, %s59
    %p66 = scmp.eq.s32.totalorder %s14, 1
    %p67 = por %p65, %p66
    %p68 = scmp.ne.s32.totalorder %s59, %s60
    %p69 = scmp.eq.s32.totalorder %s14, 0
    %p70 = por %p68, %p69
    %p71 = scmp.ne.s32.totalorder %s59, %s60
    %p72 = scmp.eq.s32.totalorder %s15, 1
    %p73 = por %p71, %p72
    %p75 = scmp.ne.s32.totalorder %s60, %s74
    %p76 = scmp.eq.s32.totalorder %s15, 0
    %p77 = por %p75, %p76
    %s79 = sadd.s32 %s78, 1
    %p82 = scmp.eq.s32.totalorder %s9, 1
    %p83 = scmp.ne.s32.totalorder %s78, %s80
    %p84 = scmp.eq.s32.totalorder %s9, 0
    %p85 = por %p83, %p84
    %p86 = scmp.ne.s32.totalorder %s78, %s80
    %p87 = scmp.eq.s32.totalorder %s14, 1
    %p88 = por %p86, %p87
    %p89 = scmp.ne.s32.totalorder %s80, %s81
    %p90 = scmp.eq.s32.totalorder %s14, 0
    %p91 = por %p89, %p90
    %p92 = scmp.ne.s32.totalorder %s80, %s81
    %p93 = scmp.eq.s32.totalorder %s15, 1
    %p94 = por %p92, %p93
    %p96 = scmp.ne.s32.totalorder %s81, %s95
    %p97 = scmp.eq.s32.totalorder %s15, 0
    %p98 = por %p96, %p97
    %s99 = ssub.s32 %s16, %s28
    %s100 = ssub.s32 %s17, %s24
    %s101 = sor.u32 %s99, %s100
    %p102 = scmp.eq.s32.totalorder %s101, 0
    %s104 = sadd.s32 %s103, 1
    %s105 = scalar_select %p102, %s103, %s104
    %p108 = pneg %p102
    %p109 = scmp.eq.s32.totalorder %s9, 1
    %p110 = por %p108, %p109
    %p111 = scmp.ne.s32.totalorder %s103, %s106
    %p112 = scmp.eq.s32.totalorder %s9, 0
    %p113 = por %p111, %p112
    %p114 = scmp.ne.s32.totalorder %s103, %s106
    %p115 = scmp.eq.s32.totalorder %s14, 1
    %p116 = por %p114, %p115
    %p117 = scmp.ne.s32.totalorder %s106, %s107
    %p118 = scmp.eq.s32.totalorder %s14, 0
    %p119 = por %p117, %p118
    %p120 = scmp.ne.s32.totalorder %s106, %s107
    %p121 = scmp.eq.s32.totalorder %s15, 1
    %p122 = por %p120, %p121
    %p124 = scmp.ne.s32.totalorder %s107, %s123
    %p125 = scmp.eq.s32.totalorder %s15, 0
    %p126 = por %p124, %p125
    %p127 = scmp.le.s32.totalorder 1, %s9
    %p128 = scmp.lt.s32.totalorder %s9, 3
    %p129 = pnand %p127, %p128
    %p130 = pneg %p129
    // Predicated region
    $region9: #{conv1x1_batchnorm.3} parent=5 // pred_check
      _
    $region10: #{conv1x1_batchnorm.3} parent=5 // pred_check_branch
      %132 = sbr.rel (%p129) target = $region12
    $region11: #{conv1x1_batchnorm.3} parent=5 // pred_region
      %s133 = ssub.s32 %s9, 1
      // Predicated region
      $region13: #{conv1x1_batchnorm.3} parent=11 // pred_check
        %p134 = pneg %p70
      $region14: #{conv1x1_batchnorm.3} parent=11 // pred_check_branch
        %136 = sbr.rel (%p134) target = $region16
      $region15: #{conv1x1_batchnorm.3} parent=11 // pred_region
        _
      $region16: #{conv1x1_batchnorm.3} parent=11 // pred_fallthru
        _
      // Predicated region
      $region17: #{conv1x1_batchnorm.3} parent=11 // pred_check
        %p137 = pneg %p91
      $region18: #{conv1x1_batchnorm.3} parent=11 // pred_check_branch
        %139 = sbr.rel (%p137) target = $region20
      $region19: #{conv1x1_batchnorm.3} parent=11 // pred_region
        _
      $region20: #{conv1x1_batchnorm.3} parent=11 // pred_fallthru
        _
    $region12: #{conv1x1_batchnorm.3} parent=5 // pred_fallthru
      _
    %p140 = scmp.lt.s32.totalorder %s9, 2
    // Predicated region
    $region21: #{conv1x1_batchnorm.3} parent=5 // pred_check
      %p141 = pneg %p140
    $region22: #{conv1x1_batchnorm.3} parent=5 // pred_check_branch
      %143 = sbr.rel (%p141) target = $region24
    $region23: #{conv1x1_batchnorm.3} parent=5 // pred_region
      // Predicated region
      $region25: #{conv1x1_batchnorm.3} parent=23 // pred_check
        %p144 = pneg %p43
      $region26: #{conv1x1_batchnorm.3} parent=23 // pred_check_branch
        %146 = sbr.rel (%p144) target = $region28
      $region27: #{conv1x1_batchnorm.3} parent=23 // pred_region
        %s147 = smul.u32 5, %s17
        %p148 = scmp.lt.s32.totalorder %s16, 1
        %s149 = scalar_select %p148, %s16, 1
        %p150 = scmp.lt.s32.totalorder %s147, 4
        %s151 = scalar_select %p150, %s147, 4
        %s152 = smul.addr %s149, 40
        %s153 = sadd.s32 %s151, %s152
        %s154 = smul.addr %s153, 8
        %s155 = scalar_lea.vmem %s0, %s154
        %s156 = smul.u32 5, %s17
      $region28: #{conv1x1_batchnorm.3} parent=23 // pred_fallthru
        _
    $region24: #{conv1x1_batchnorm.3} parent=5 // pred_fallthru
      _
    %p157 = scmp.le.s32.totalorder 1, %s9
    %p158 = scmp.lt.s32.totalorder %s9, 3
    %p159 = pnand %p157, %p158
    %p160 = pneg %p159
    // Predicated region
    $region29: #{conv1x1_batchnorm.3} parent=5 // pred_check
      _
    $region30: #{conv1x1_batchnorm.3} parent=5 // pred_check_branch
      %162 = sbr.rel (%p159) target = $region32
    $region31: #{conv1x1_batchnorm.3} parent=5 // pred_region
      %s163 = ssub.s32 %s9, 1
      %s164 = smul.u32 5, %s19
      %p165 = scmp.lt.s32.totalorder %s18, 1
      %s166 = scalar_select %p165, %s18, 1
      %p167 = scmp.lt.s32.totalorder %s164, 4
      %s168 = scalar_select %p167, %s164, 4
      %s169 = smul.addr %s166, 40
      %s170 = sadd.s32 %s168, %s169
      %s171 = smul.addr %s170, 8
      %s172 = scalar_lea.vmem %s0, %s171
      %p173 = pneg %p49
      %p174 = pneg %p46
      %p175 = pneg %p70
      %p176 = pneg %p67
      %p177 = pneg %p91
      %p178 = pneg %p88
      %p179 = pneg %p119
      %p180 = pneg %p116
      %s181 = smul.u32 5, %s19
      %p182 = scmp.lt.s32.totalorder %s18, 1
      %s183 = scalar_select %p182, %s18, 1
      %p184 = scmp.lt.s32.totalorder %s181, 4
      %s185 = scalar_select %p184, %s181, 4
      %s186 = smul.addr %s183, 40
      %s187 = sadd.s32 %s185, %s186
      %s188 = smul.addr %s187, 8
      %s189 = scalar_lea.vmem %s3, %s188
      %s190 = smul.u32 5, %s19
      %p191 = scmp.lt.s32.totalorder %s18, 1
      %s192 = scalar_select %p191, %s18, 1
      %p193 = scmp.lt.s32.totalorder %s190, 4
      %s194 = scalar_select %p193, %s190, 4
      %s195 = smul.addr %s192, 40
      %s196 = sadd.s32 %s194, %s195
      %s197 = smul.addr %s196, 8
      %s198 = scalar_lea.vmem %s0, %s197
      %s199 = smul.u32 5, %s19
      %s200 = smul.u32 5, %s19
      %p201 = scmp.lt.s32.totalorder %s18, 1
      %s202 = scalar_select %p201, %s18, 1
      %p203 = scmp.lt.s32.totalorder %s200, 4
      %s204 = scalar_select %p203, %s200, 4
      %s205 = smul.addr %s202, 40
      %s206 = sadd.s32 %s204, %s205
      %s207 = smul.addr %s206, 8
      %s208 = scalar_lea.vmem %s3, %s207
      %s209 = smul.u32 5, %s19
      %v210 = vld [vmem:[%s198] sm:$0xff]
      %v211 = vld [vmem:[%s198 + $0x8] sm:$0xff]
      %v212 = vld [vmem:[%s198 + $0x10] sm:$0xff]
      %v213 = vld [vmem:[%s198 + $0x18] sm:$0xff]
      %v214 = vld [vmem:[%s198 + $0x20] sm:$0xff]
      %v215 = vld [vmem:[%s198 + $0x28] sm:$0xff]
      %v216 = vld [vmem:[%s198 + $0x30] sm:$0xff]
      %v217 = vld [vmem:[%s198 + $0x38] sm:$0xff]
      %v218 = vld [vmem:[%s198 + $0x40] sm:$0xff]
      %v219 = vld [vmem:[%s198 + $0x48] sm:$0xff]
      %v220 = vld [vmem:[%s198 + $0x50] sm:$0xff]
      %v221 = vld [vmem:[%s198 + $0x58] sm:$0xff]
      %v222 = vld [vmem:[%s198 + $0x60] sm:$0xff]
      %v223 = vld [vmem:[%s198 + $0x68] sm:$0xff]
      %v224 = vld [vmem:[%s198 + $0x70] sm:$0xff]
      %v225 = vld [vmem:[%s198 + $0x78] sm:$0xff]
      %v226 = vld [vmem:[%s198 + $0x80] sm:$0xff]
      %v227 = vld [vmem:[%s198 + $0x88] sm:$0xff]
      %v228 = vld [vmem:[%s198 + $0x90] sm:$0xff]
      %v229 = vld [vmem:[%s198 + $0x98] sm:$0xff]
      %v230 = vld [vmem:[%s198 + $0xa0] sm:$0xff]
      %v231 = vld [vmem:[%s198 + $0xa8] sm:$0xff]
      %v232 = vld [vmem:[%s198 + $0xb0] sm:$0xff]
      %v233 = vld [vmem:[%s198 + $0xb8] sm:$0xff]
      %v234 = vld [vmem:[%s198 + $0xc0] sm:$0xff]
      %v235 = vld [vmem:[%s198 + $0xc8] sm:$0xff]
      %v236 = vld [vmem:[%s198 + $0xd0] sm:$0xff]
      %v237 = vld [vmem:[%s198 + $0xd8] sm:$0xff]
      %v238 = vld [vmem:[%s198 + $0xe0] sm:$0xff]
      %v239 = vld [vmem:[%s198 + $0xe8] sm:$0xff]
      %v240 = vld [vmem:[%s198 + $0xf0] sm:$0xff]
      %v241 = vld [vmem:[%s198 + $0xf8] sm:$0xff]
      %v242 = vld [vmem:[%s198 + $0x100] sm:$0xff]
      %v243 = vld [vmem:[%s198 + $0x108] sm:$0xff]
      %v244 = vld [vmem:[%s198 + $0x110] sm:$0xff]
      %v245 = vld [vmem:[%s198 + $0x118] sm:$0xff]
      %v246 = vld [vmem:[%s198 + $0x120] sm:$0xff]
      %v247 = vld [vmem:[%s198 + $0x128] sm:$0xff]
      %v248 = vld [vmem:[%s198 + $0x130] sm:$0xff]
      %v249 = vld [vmem:[%s198 + $0x138] sm:$0xff]
      %v250 = vld [vmem:[%s1] sm:$0xff]
      %v251 = vld [vmem:[%s1 + $0x8] sm:$0xff]
      %v252 = vld [vmem:[%s1 + $0x10] sm:$0xff]
      %v253 = vld [vmem:[%s1 + $0x18] sm:$0xff]
      %v254 = vld [vmem:[%s1 + $0x20] sm:$0xff]
      %v255 = vld [vmem:[%s1 + $0x28] sm:$0xff]
      %v256 = vld [vmem:[%s1 + $0x30] sm:$0xff]
      %v257 = vld [vmem:[%s1 + $0x38] sm:$0xff]
      %259 = vset.pattern.permute.xlu0 0
      %260 = vperm.xlu0 %259, %v250
      %v261 = vpop.permute.xlu0 %260
      %264 = vset.pattern.permute.xlu0 0
      %265 = vperm.xlu0 %264, %v251
      %v266 = vpop.permute.xlu0 %265
      %269 = vset.pattern.permute.xlu0 0
      %270 = vperm.xlu0 %269, %v252
      %v271 = vpop.permute.xlu0 %270
      %274 = vset.pattern.permute.xlu0 0
      %275 = vperm.xlu0 %274, %v253
      %v276 = vpop.permute.xlu0 %275
      %279 = vset.pattern.permute.xlu0 0
      %280 = vperm.xlu0 %279, %v254
      %v281 = vpop.permute.xlu0 %280
      %284 = vset.pattern.permute.xlu0 0
      %285 = vperm.xlu0 %284, %v255
      %v286 = vpop.permute.xlu0 %285
      %289 = vset.pattern.permute.xlu0 0
      %290 = vperm.xlu0 %289, %v256
      %v291 = vpop.permute.xlu0 %290
      %294 = vset.pattern.permute.xlu0 0
      %295 = vperm.xlu0 %294, %v257
      %v296 = vpop.permute.xlu0 %295
      %v298 = vmul.f32 %v210, %v261
      %v299 = vmul.f32 %v211, %v261
      %v300 = vmul.f32 %v212, %v261
      %v301 = vmul.f32 %v213, %v261
      %v302 = vmul.f32 %v214, %v261
      %v303 = vmul.f32 %v215, %v266
      %v304 = vmul.f32 %v216, %v266
      %v305 = vmul.f32 %v217, %v266
      %v306 = vmul.f32 %v218, %v266
      %v307 = vmul.f32 %v219, %v266
      %v308 = vmul.f32 %v220, %v271
      %v309 = vmul.f32 %v221, %v271
      %v310 = vmul.f32 %v222, %v271
      %v311 = vmul.f32 %v223, %v271
      %v312 = vmul.f32 %v224, %v271
      %v313 = vmul.f32 %v225, %v276
      %v314 = vmul.f32 %v226, %v276
      %v315 = vmul.f32 %v227, %v276
      %v316 = vmul.f32 %v228, %v276
      %v317 = vmul.f32 %v229, %v276
      %v318 = vmul.f32 %v230, %v281
      %v319 = vmul.f32 %v231, %v281
      %v320 = vmul.f32 %v232, %v281
      %v321 = vmul.f32 %v233, %v281
      %v322 = vmul.f32 %v234, %v281
      %v323 = vmul.f32 %v235, %v286
      %v324 = vmul.f32 %v236, %v286
      %v325 = vmul.f32 %v237, %v286
      %v326 = vmul.f32 %v238, %v286
      %v327 = vmul.f32 %v239, %v286
      %v328 = vmul.f32 %v240, %v291
      %v329 = vmul.f32 %v241, %v291
      %v330 = vmul.f32 %v242, %v291
      %v331 = vmul.f32 %v243, %v291
      %v332 = vmul.f32 %v244, %v291
      %v333 = vmul.f32 %v245, %v296
      %v334 = vmul.f32 %v246, %v296
      %v335 = vmul.f32 %v247, %v296
      %v336 = vmul.f32 %v248, %v296
      %v337 = vmul.f32 %v249, %v296
      %v338 = vld [vmem:[%s2] sm:$0xff]
      %v339 = vld [vmem:[%s2 + $0x8] sm:$0xff]
      %v340 = vld [vmem:[%s2 + $0x10] sm:$0xff]
      %v341 = vld [vmem:[%s2 + $0x18] sm:$0xff]
      %v342 = vld [vmem:[%s2 + $0x20] sm:$0xff]
      %v343 = vld [vmem:[%s2 + $0x28] sm:$0xff]
      %v344 = vld [vmem:[%s2 + $0x30] sm:$0xff]
      %v345 = vld [vmem:[%s2 + $0x38] sm:$0xff]
      %347 = vset.pattern.permute.xlu0 0
      %348 = vperm.xlu0 %347, %v338
      %v349 = vpop.permute.xlu0 %348
      %352 = vset.pattern.permute.xlu0 0
      %353 = vperm.xlu0 %352, %v339
      %v354 = vpop.permute.xlu0 %353
      %357 = vset.pattern.permute.xlu0 0
      %358 = vperm.xlu0 %357, %v340
      %v359 = vpop.permute.xlu0 %358
      %362 = vset.pattern.permute.xlu0 0
      %363 = vperm.xlu0 %362, %v341
      %v364 = vpop.permute.xlu0 %363
      %367 = vset.pattern.permute.xlu0 0
      %368 = vperm.xlu0 %367, %v342
      %v369 = vpop.permute.xlu0 %368
      %372 = vset.pattern.permute.xlu0 0
      %373 = vperm.xlu0 %372, %v343
      %v374 = vpop.permute.xlu0 %373
      %377 = vset.pattern.permute.xlu0 0
      %378 = vperm.xlu0 %377, %v344
      %v379 = vpop.permute.xlu0 %378
      %382 = vset.pattern.permute.xlu0 0
      %383 = vperm.xlu0 %382, %v345
      %v384 = vpop.permute.xlu0 %383
      %v386 = vadd.f32 %v298, %v349
      %v387 = vadd.f32 %v299, %v349
      %v388 = vadd.f32 %v300, %v349
      %v389 = vadd.f32 %v301, %v349
      %v390 = vadd.f32 %v302, %v349
      %v391 = vadd.f32 %v303, %v354
      %v392 = vadd.f32 %v304, %v354
      %v393 = vadd.f32 %v305, %v354
      %v394 = vadd.f32 %v306, %v354
      %v395 = vadd.f32 %v307, %v354
      %v396 = vadd.f32 %v308, %v359
      %v397 = vadd.f32 %v309, %v359
      %v398 = vadd.f32 %v310, %v359
      %v399 = vadd.f32 %v311, %v359
      %v400 = vadd.f32 %v312, %v359
      %v401 = vadd.f32 %v313, %v364
      %v402 = vadd.f32 %v314, %v364
      %v403 = vadd.f32 %v315, %v364
      %v404 = vadd.f32 %v316, %v364
      %v405 = vadd.f32 %v317, %v364
      %v406 = vadd.f32 %v318, %v369
      %v407 = vadd.f32 %v319, %v369
      %v408 = vadd.f32 %v320, %v369
      %v409 = vadd.f32 %v321, %v369
      %v410 = vadd.f32 %v322, %v369
      %v411 = vadd.f32 %v323, %v374
      %v412 = vadd.f32 %v324, %v374
      %v413 = vadd.f32 %v325, %v374
      %v414 = vadd.f32 %v326, %v374
      %v415 = vadd.f32 %v327, %v374
      %v416 = vadd.f32 %v328, %v379
      %v417 = vadd.f32 %v329, %v379
      %v418 = vadd.f32 %v330, %v379
      %v419 = vadd.f32 %v331, %v379
      %v420 = vadd.f32 %v332, %v379
      %v421 = vadd.f32 %v333, %v384
      %v422 = vadd.f32 %v334, %v384
      %v423 = vadd.f32 %v335, %v384
      %v424 = vadd.f32 %v336, %v384
      %v425 = vadd.f32 %v337, %v384
      %426 = vst [vmem:[%s208] sm:$0xff] %v386
      %427 = vst [vmem:[%s208 + $0x8] sm:$0xff] %v387
      %428 = vst [vmem:[%s208 + $0x10] sm:$0xff] %v388
      %429 = vst [vmem:[%s208 + $0x18] sm:$0xff] %v389
      %430 = vst [vmem:[%s208 + $0x20] sm:$0xff] %v390
      %431 = vst [vmem:[%s208 + $0x28] sm:$0xff] %v391
      %432 = vst [vmem:[%s208 + $0x30] sm:$0xff] %v392
      %433 = vst [vmem:[%s208 + $0x38] sm:$0xff] %v393
      %434 = vst [vmem:[%s208 + $0x40] sm:$0xff] %v394
      %435 = vst [vmem:[%s208 + $0x48] sm:$0xff] %v395
      %436 = vst [vmem:[%s208 + $0x50] sm:$0xff] %v396
      %437 = vst [vmem:[%s208 + $0x58] sm:$0xff] %v397
      %438 = vst [vmem:[%s208 + $0x60] sm:$0xff] %v398
      %439 = vst [vmem:[%s208 + $0x68] sm:$0xff] %v399
      %440 = vst [vmem:[%s208 + $0x70] sm:$0xff] %v400
      %441 = vst [vmem:[%s208 + $0x78] sm:$0xff] %v401
      %442 = vst [vmem:[%s208 + $0x80] sm:$0xff] %v402
      %443 = vst [vmem:[%s208 + $0x88] sm:$0xff] %v403
      %444 = vst [vmem:[%s208 + $0x90] sm:$0xff] %v404
      %445 = vst [vmem:[%s208 + $0x98] sm:$0xff] %v405
      %446 = vst [vmem:[%s208 + $0xa0] sm:$0xff] %v406
      %447 = vst [vmem:[%s208 + $0xa8] sm:$0xff] %v407
      %448 = vst [vmem:[%s208 + $0xb0] sm:$0xff] %v408
      %449 = vst [vmem:[%s208 + $0xb8] sm:$0xff] %v409
      %450 = vst [vmem:[%s208 + $0xc0] sm:$0xff] %v410
      %451 = vst [vmem:[%s208 + $0xc8] sm:$0xff] %v411
      %452 = vst [vmem:[%s208 + $0xd0] sm:$0xff] %v412
      %453 = vst [vmem:[%s208 + $0xd8] sm:$0xff] %v413
      %454 = vst [vmem:[%s208 + $0xe0] sm:$0xff] %v414
      %455 = vst [vmem:[%s208 + $0xe8] sm:$0xff] %v415
      %456 = vst [vmem:[%s208 + $0xf0] sm:$0xff] %v416
      %457 = vst [vmem:[%s208 + $0xf8] sm:$0xff] %v417
      %458 = vst [vmem:[%s208 + $0x100] sm:$0xff] %v418
      %459 = vst [vmem:[%s208 + $0x108] sm:$0xff] %v419
      %460 = vst [vmem:[%s208 + $0x110] sm:$0xff] %v420
      %461 = vst [vmem:[%s208 + $0x118] sm:$0xff] %v421
      %462 = vst [vmem:[%s208 + $0x120] sm:$0xff] %v422
      %463 = vst [vmem:[%s208 + $0x128] sm:$0xff] %v423
      %464 = vst [vmem:[%s208 + $0x130] sm:$0xff] %v424
      %465 = vst [vmem:[%s208 + $0x138] sm:$0xff] %v425
      %s466 = smul.u32 5, %s19
      %p467 = scmp.lt.s32.totalorder %s18, 1
      %s468 = scalar_select %p467, %s18, 1
      %p469 = scmp.lt.s32.totalorder %s466, 4
      %s470 = scalar_select %p469, %s466, 4
      %s471 = smul.addr %s468, 40
      %s472 = sadd.s32 %s470, %s471
      %s473 = smul.addr %s472, 8
      %s474 = scalar_lea.vmem %s3, %s473
      // Predicated region
      $region33: #{conv1x1_batchnorm.3} parent=31 // pred_check
        %p475 = pneg %p116
      $region34: #{conv1x1_batchnorm.3} parent=31 // pred_check_branch
        %477 = sbr.rel (%p475) target = $region36
      $region35: #{conv1x1_batchnorm.3} parent=31 // pred_region
        %s478 = smul.u32 5, %s19
      $region36: #{conv1x1_batchnorm.3} parent=31 // pred_fallthru
        _
    $region32: #{conv1x1_batchnorm.3} parent=5 // pred_fallthru
      _
    %p479 = scmp.le.s32.totalorder 2, %s9
    // Predicated region
    $region37: #{conv1x1_batchnorm.3} parent=5 // pred_check
      %p480 = pneg %p479
    $region38: #{conv1x1_batchnorm.3} parent=5 // pred_check_branch
      %482 = sbr.rel (%p480) target = $region40
    $region39: #{conv1x1_batchnorm.3} parent=5 // pred_region
      %s483 = ssub.s32 %s9, 2
      // Predicated region
      $region41: #{conv1x1_batchnorm.3} parent=39 // pred_check
        %p484 = pneg %p122
      $region42: #{conv1x1_batchnorm.3} parent=39 // pred_check_branch
        %486 = sbr.rel (%p484) target = $region44
      $region43: #{conv1x1_batchnorm.3} parent=39 // pred_region
        %s487 = smul.u32 5, %s21
        %p488 = scmp.lt.s32.totalorder %s20, 1
        %s489 = scalar_select %p488, %s20, 1
        %p490 = scmp.lt.s32.totalorder %s487, 4
        %s491 = scalar_select %p490, %s487, 4
        %s492 = smul.addr %s489, 40
        %s493 = sadd.s32 %s491, %s492
        %s494 = smul.addr %s493, 8
        %s495 = scalar_lea.vmem %s3, %s494
      $region44: #{conv1x1_batchnorm.3} parent=39 // pred_fallthru
        _
    $region40: #{conv1x1_batchnorm.3} parent=5 // pred_fallthru
      _
  $region6: #{conv1x1_batchnorm.3} parent=0 // loop_footer
    %s13 = sadd.s32 1, %s9
  $region7: #{conv1x1_batchnorm.3} parent=0 // loop_footer_branch
    %8 = sbr.rel target = $region3
  $region8: #{conv1x1_batchnorm.3} parent=0 // loop_exit
    _

// kernel: conv1x1_batchnorm.2
$region0: #{conv1x1_batchnorm.2}
  #allocation0 [shape = 'u32[]', space=smem, size = 0x4, offset = 0x4, fixed_abs, tag = 'smem constant byte address 0x4 - core index']
  #allocation1 [shape = 'u32[144,128]{1,0:T(1,128)}', space=vmem, size = 0x12000, scoped, tag = 'internal scratch']
  %s0 = inlined_call_operand.vmem [shape: f32[2,288,640], index: 0, kind: input, shape index: {}]
  %s1 = inlined_call_operand.vmem [shape: f32[64,288], index: 1, kind: input, shape index: {}]
  %s2 = inlined_call_operand.vmem [shape: f32[2,64,640], index: 2, kind: output, shape index: {0}]
  %s3 = inlined_call_operand.vmem [shape: f32[2,1,64,1], index: 3, kind: output, shape index: {1}]
  %s4 = inlined_call_operand.vmem [shape: f32[2,1,64,1], index: 4, kind: output, shape index: {2}]
  %5 = xla_tuple %s2, %s3, %s4
  %s6 = sld [smem:[#allocation0]]
  $region57: #{conv1x1_batchnorm.2} parent=0
    _
  %s8 = ssub.s32 1, %s6
  %s9 = scalar_select 0, %s8, %s6
  loop: start=0, step=1, limit=4
  $region2: #{conv1x1_batchnorm.2} parent=0 // loop_pre_header
    _
  $region3: #{conv1x1_batchnorm.2} parent=0 // loop_header
    %s11 = sphi 0, %s15
    %p12 = scmp.ge.s32.totalorder %s11, 4
    %s18 = sphi 0, %s30
    %s19 = sphi 0, %s26
    %s20 = sphi 0, %s18
    %s21 = sphi 0, %s19
    %s22 = sphi 0, %s20
    %s23 = sphi 0, %s21
    %s35 = sphi 0, %s37
    %s38 = sphi 0, %s35
    %s39 = sphi 0, %s38
    %s55 = sphi 0, %s39
    %s59 = sphi 0, %s59
    %s61 = sphi 0, %s59
    %s62 = sphi 0, %s61
    %s76 = sphi 0, %s62
    %s84 = sphi 0, %s86
    %s87 = sphi 0, %s84
    %s88 = sphi 0, %s87
    %s104 = sphi 0, %s88
    %s112 = sphi 0, %s114
    %s115 = sphi 0, %s112
    %s116 = sphi 0, %s115
    %s132 = sphi 0, %s116
    %s140 = sphi 0, %s142
    %s143 = sphi 0, %s140
    %s144 = sphi 0, %s143
    %s160 = sphi 0, %s144
  $region4: #{conv1x1_batchnorm.2} parent=0 // loop_header_branch
    %14 = sbr.rel (%p12) target = $region8
  $region5: #{conv1x1_batchnorm.2} parent=0 // loop_body
    %s16 = ssub.s32 %s11, 1
    %s17 = ssub.s32 %s11, 2
    %s24 = sadd.s32 1, %s19
    %p25 = scmp.ge.s32.totalorder %s24, 1
    %s26 = scalar_select %p25, 0, %s24
    %s27 = sadd.s32 1, %s18
    %s28 = scalar_select %p25, %s27, %s18
    %p29 = scmp.ge.s32.totalorder %s28, 2
    %s30 = scalar_select %p29, 0, %s28
    %s31 = ssub.s32 %s18, %s30
    %s32 = ssub.s32 %s19, %s26
    %s33 = sor.u32 %s31, %s32
    %p34 = scmp.eq.s32.totalorder %s33, 0
    %s36 = sadd.s32 %s35, 1
    %s37 = scalar_select %p34, %s35, %s36
    %p40 = pneg %p34
    %p41 = scmp.eq.s32.totalorder %s11, 1
    %p42 = por %p40, %p41
    %p43 = scmp.ne.s32.totalorder %s35, %s38
    %p44 = scmp.eq.s32.totalorder %s11, 0
    %p45 = por %p43, %p44
    %p46 = scmp.ne.s32.totalorder %s35, %s38
    %p47 = scmp.eq.s32.totalorder %s16, 1
    %p48 = por %p46, %p47
    %p49 = scmp.ne.s32.totalorder %s38, %s39
    %p50 = scmp.eq.s32.totalorder %s16, 0
    %p51 = por %p49, %p50
    %p52 = scmp.ne.s32.totalorder %s38, %s39
    %p53 = scmp.eq.s32.totalorder %s17, 1
    %p54 = por %p52, %p53
    %p56 = scmp.ne.s32.totalorder %s39, %s55
    %p57 = scmp.eq.s32.totalorder %s17, 0
    %p58 = por %p56, %p57
    %s60 = sadd.s32 %s59, 1
    %p63 = scmp.eq.s32.totalorder %s11, 1
    %p64 = scmp.ne.s32.totalorder %s59, %s61
    %p65 = scmp.eq.s32.totalorder %s11, 0
    %p66 = por %p64, %p65
    %p67 = scmp.ne.s32.totalorder %s59, %s61
    %p68 = scmp.eq.s32.totalorder %s16, 1
    %p69 = por %p67, %p68
    %p70 = scmp.ne.s32.totalorder %s61, %s62
    %p71 = scmp.eq.s32.totalorder %s16, 0
    %p72 = por %p70, %p71
    %p73 = scmp.ne.s32.totalorder %s61, %s62
    %p74 = scmp.eq.s32.totalorder %s17, 1
    %p75 = por %p73, %p74
    %p77 = scmp.ne.s32.totalorder %s62, %s76
    %p78 = scmp.eq.s32.totalorder %s17, 0
    %p79 = por %p77, %p78
    %s80 = ssub.s32 %s18, %s30
    %s81 = ssub.s32 %s19, %s26
    %s82 = sor.u32 %s80, %s81
    %p83 = scmp.eq.s32.totalorder %s82, 0
    %s85 = sadd.s32 %s84, 1
    %s86 = scalar_select %p83, %s84, %s85
    %p89 = pneg %p83
    %p90 = scmp.eq.s32.totalorder %s11, 1
    %p91 = por %p89, %p90
    %p92 = scmp.ne.s32.totalorder %s84, %s87
    %p93 = scmp.eq.s32.totalorder %s11, 0
    %p94 = por %p92, %p93
    %p95 = scmp.ne.s32.totalorder %s84, %s87
    %p96 = scmp.eq.s32.totalorder %s16, 1
    %p97 = por %p95, %p96
    %p98 = scmp.ne.s32.totalorder %s87, %s88
    %p99 = scmp.eq.s32.totalorder %s16, 0
    %p100 = por %p98, %p99
    %p101 = scmp.ne.s32.totalorder %s87, %s88
    %p102 = scmp.eq.s32.totalorder %s17, 1
    %p103 = por %p101, %p102
    %p105 = scmp.ne.s32.totalorder %s88, %s104
    %p106 = scmp.eq.s32.totalorder %s17, 0
    %p107 = por %p105, %p106
    %s108 = ssub.s32 %s18, %s30
    %s109 = ssub.s32 %s19, %s26
    %s110 = sor.u32 %s108, %s109
    %p111 = scmp.eq.s32.totalorder %s110, 0
    %s113 = sadd.s32 %s112, 1
    %s114 = scalar_select %p111, %s112, %s113
    %p117 = pneg %p111
    %p118 = scmp.eq.s32.totalorder %s11, 1
    %p119 = por %p117, %p118
    %p120 = scmp.ne.s32.totalorder %s112, %s115
    %p121 = scmp.eq.s32.totalorder %s11, 0
    %p122 = por %p120, %p121
    %p123 = scmp.ne.s32.totalorder %s112, %s115
    %p124 = scmp.eq.s32.totalorder %s16, 1
    %p125 = por %p123, %p124
    %p126 = scmp.ne.s32.totalorder %s115, %s116
    %p127 = scmp.eq.s32.totalorder %s16, 0
    %p128 = por %p126, %p127
    %p129 = scmp.ne.s32.totalorder %s115, %s116
    %p130 = scmp.eq.s32.totalorder %s17, 1
    %p131 = por %p129, %p130
    %p133 = scmp.ne.s32.totalorder %s116, %s132
    %p134 = scmp.eq.s32.totalorder %s17, 0
    %p135 = por %p133, %p134
    %s136 = ssub.s32 %s18, %s30
    %s137 = ssub.s32 %s19, %s26
    %s138 = sor.u32 %s136, %s137
    %p139 = scmp.eq.s32.totalorder %s138, 0
    %s141 = sadd.s32 %s140, 1
    %s142 = scalar_select %p139, %s140, %s141
    %p145 = pneg %p139
    %p146 = scmp.eq.s32.totalorder %s11, 1
    %p147 = por %p145, %p146
    %p148 = scmp.ne.s32.totalorder %s140, %s143
    %p149 = scmp.eq.s32.totalorder %s11, 0
    %p150 = por %p148, %p149
    %p151 = scmp.ne.s32.totalorder %s140, %s143
    %p152 = scmp.eq.s32.totalorder %s16, 1
    %p153 = por %p151, %p152
    %p154 = scmp.ne.s32.totalorder %s143, %s144
    %p155 = scmp.eq.s32.totalorder %s16, 0
    %p156 = por %p154, %p155
    %p157 = scmp.ne.s32.totalorder %s143, %s144
    %p158 = scmp.eq.s32.totalorder %s17, 1
    %p159 = por %p157, %p158
    %p161 = scmp.ne.s32.totalorder %s144, %s160
    %p162 = scmp.eq.s32.totalorder %s17, 0
    %p163 = por %p161, %p162
    %p164 = scmp.le.s32.totalorder 1, %s11
    %p165 = scmp.lt.s32.totalorder %s11, 3
    %p166 = pnand %p164, %p165
    %p167 = pneg %p166
    // Predicated region
    $region9: #{conv1x1_batchnorm.2} parent=5 // pred_check
      _
    $region10: #{conv1x1_batchnorm.2} parent=5 // pred_check_branch
      %169 = sbr.rel (%p166) target = $region12
    $region11: #{conv1x1_batchnorm.2} parent=5 // pred_region
      %s170 = ssub.s32 %s11, 1
      // Predicated region
      $region13: #{conv1x1_batchnorm.2} parent=11 // pred_check
        %p171 = pneg %p72
      $region14: #{conv1x1_batchnorm.2} parent=11 // pred_check_branch
        %173 = sbr.rel (%p171) target = $region16
      $region15: #{conv1x1_batchnorm.2} parent=11 // pred_region
        _
      $region16: #{conv1x1_batchnorm.2} parent=11 // pred_fallthru
        _
    $region12: #{conv1x1_batchnorm.2} parent=5 // pred_fallthru
      _
    %p174 = scmp.lt.s32.totalorder %s11, 2
    // Predicated region
    $region17: #{conv1x1_batchnorm.2} parent=5 // pred_check
      %p175 = pneg %p174
    $region18: #{conv1x1_batchnorm.2} parent=5 // pred_check_branch
      %177 = sbr.rel (%p175) target = $region20
    $region19: #{conv1x1_batchnorm.2} parent=5 // pred_region
      // Predicated region
      $region21: #{conv1x1_batchnorm.2} parent=19 // pred_check
        %p178 = pneg %p45
      $region22: #{conv1x1_batchnorm.2} parent=19 // pred_check_branch
        %180 = sbr.rel (%p178) target = $region24
      $region23: #{conv1x1_batchnorm.2} parent=19 // pred_region
        %s181 = smul.u32 5, %s19
        %p182 = scmp.lt.s32.totalorder %s18, 1
        %s183 = scalar_select %p182, %s18, 1
        %p184 = scmp.lt.s32.totalorder %s181, 4
        %s185 = scalar_select %p184, %s181, 4
        %s186 = smul.addr %s183, 180
        %s187 = sadd.s32 %s185, %s186
        %s188 = smul.addr %s187, 8
        %s189 = scalar_lea.vmem %s0, %s188
        %s190 = smul.u32 5, %s19
      $region24: #{conv1x1_batchnorm.2} parent=19 // pred_fallthru
        _
    $region20: #{conv1x1_batchnorm.2} parent=5 // pred_fallthru
      _
    %p191 = scmp.le.s32.totalorder 1, %s11
    %p192 = scmp.lt.s32.totalorder %s11, 3
    %p193 = pnand %p191, %p192
    %p194 = pneg %p193
    // Predicated region
    $region25: #{conv1x1_batchnorm.2} parent=5 // pred_check
      _
    $region26: #{conv1x1_batchnorm.2} parent=5 // pred_check_branch
      %196 = sbr.rel (%p193) target = $region28
    $region27: #{conv1x1_batchnorm.2} parent=5 // pred_region
      %s197 = ssub.s32 %s11, 1
      %s198 = smul.u32 5, %s21
      %p199 = scmp.lt.s32.totalorder %s20, 1
      %s200 = scalar_select %p199, %s20, 1
      %p201 = scmp.lt.s32.totalorder %s198, 4
      %s202 = scalar_select %p201, %s198, 4
      %s203 = smul.addr %s200, 180
      %s204 = sadd.s32 %s202, %s203
      %s205 = smul.addr %s204, 8
      %s206 = scalar_lea.vmem %s0, %s205
      %p207 = pneg %p51
      %p208 = pneg %p48
      %p209 = pneg %p72
      %p210 = pneg %p69
      %p211 = pneg %p100
      %p212 = pneg %p97
      %s213 = smul.u32 5, %s21
      %p214 = scmp.lt.s32.totalorder %s20, 1
      %s215 = scalar_select %p214, %s20, 1
      %p216 = scmp.lt.s32.totalorder %s213, 4
      %s217 = scalar_select %p216, %s213, 4
      %s218 = smul.addr %s215, 40
      %s219 = sadd.s32 %s217, %s218
      %s220 = smul.addr %s219, 8
      %s221 = scalar_lea.vmem %s2, %s220
      %p222 = pneg %p128
      %p223 = pneg %p125
      %p224 = scmp.lt.s32.totalorder %s20, 1
      %s225 = scalar_select %p224, %s20, 1
      %p226 = scmp.lt.s32.totalorder %s21, 0
      %s227 = scalar_select %p226, %s21, 0
      %s228 = smul.addr %s227, 8
      %s229 = smul.addr %s225, 8
      %s230 = sadd.s32 %s228, %s229
      %s231 = smul.addr %s230, 8
      %s232 = scalar_lea.vmem %s3, %s231
      %p233 = pneg %p156
      %p234 = pneg %p153
      %p235 = scmp.lt.s32.totalorder %s20, 1
      %s236 = scalar_select %p235, %s20, 1
      %p237 = scmp.lt.s32.totalorder %s21, 0
      %s238 = scalar_select %p237, %s21, 0
      %s239 = smul.addr %s238, 8
      %s240 = smul.addr %s236, 8
      %s241 = sadd.s32 %s239, %s240
      %s242 = smul.addr %s241, 8
      %s243 = scalar_lea.vmem %s4, %s242
      %s244 = smul.u32 5, %s21
      %p245 = scmp.lt.s32.totalorder %s20, 1
      %s246 = scalar_select %p245, %s20, 1
      %p247 = scmp.lt.s32.totalorder %s244, 4
      %s248 = scalar_select %p247, %s244, 4
      %s249 = smul.addr %s246, 180
      %s250 = sadd.s32 %s248, %s249
      %s251 = smul.addr %s250, 8
      %s252 = scalar_lea.vmem %s0, %s251
      %s253 = smul.u32 5, %s21
      %s254 = smul.u32 5, %s21
      %p255 = scmp.lt.s32.totalorder %s20, 1
      %s256 = scalar_select %p255, %s20, 1
      %p257 = scmp.lt.s32.totalorder %s254, 4
      %s258 = scalar_select %p257, %s254, 4
      %s259 = smul.addr %s256, 40
      %s260 = sadd.s32 %s258, %s259
      %s261 = smul.addr %s260, 8
      %s262 = scalar_lea.vmem %s2, %s261
      %s263 = smul.u32 5, %s21
      %p264 = scmp.lt.s32.totalorder %s20, 1
      %s265 = scalar_select %p264, %s20, 1
      %p266 = scmp.lt.s32.totalorder %s21, 0
      %s267 = scalar_select %p266, %s21, 0
      %s268 = smul.addr %s267, 8
      %s269 = smul.addr %s265, 8
      %s270 = sadd.s32 %s268, %s269
      %s271 = smul.addr %s270, 8
      %s272 = scalar_lea.vmem %s3, %s271
      %p273 = scmp.lt.s32.totalorder %s20, 1
      %s274 = scalar_select %p273, %s20, 1
      %p275 = scmp.lt.s32.totalorder %s21, 0
      %s276 = scalar_select %p275, %s21, 0
      %s277 = smul.addr %s276, 8
      %s278 = smul.addr %s274, 8
      %s279 = sadd.s32 %s277, %s278
      %s280 = smul.addr %s279, 8
      %s281 = scalar_lea.vmem %s4, %s280
      %v282 = vld [vmem:[%s1] sm:$0xff]
      %v283 = vld [vmem:[%s1 + $0x8] sm:$0xff]
      %v284 = vld [vmem:[%s1 + $0x10] sm:$0xff]
      %v285 = vld [vmem:[%s1 + $0x18] sm:$0xff]
      %v286 = vld [vmem:[%s1 + $0x20] sm:$0xff]
      %v287 = vld [vmem:[%s1 + $0x28] sm:$0xff]
      %v288 = vld [vmem:[%s1 + $0x30] sm:$0xff]
      %v289 = vld [vmem:[%s1 + $0x38] sm:$0xff]
      %v290 = vld [vmem:[%s1 + $0x40] sm:$0xff]
      %v291 = vld [vmem:[%s1 + $0x48] sm:$0xff]
      %v292 = vld [vmem:[%s1 + $0x50] sm:$0xff]
      %v293 = vld [vmem:[%s1 + $0x58] sm:$0xff]
      %v294 = vld [vmem:[%s1 + $0x60] sm:$0xff]
      %v295 = vld [vmem:[%s1 + $0x68] sm:$0xff]
      %v296 = vld [vmem:[%s1 + $0x70] sm:$0xff]
      %v297 = vld [vmem:[%s1 + $0x78] sm:$0xff]
      %v298 = vld [vmem:[%s1 + $0x80] sm:$0xff]
      %v299 = vld [vmem:[%s1 + $0x88] sm:$0xff]
      %v300 = vld [vmem:[%s1 + $0x90] sm:$0xff]
      %v301 = vld [vmem:[%s1 + $0x98] sm:$0xff]
      %v302 = vld [vmem:[%s1 + $0xa0] sm:$0xff]
      %v303 = vld [vmem:[%s1 + $0xa8] sm:$0xff]
      %v304 = vld [vmem:[%s1 + $0xb0] sm:$0xff]
      %v305 = vld [vmem:[%s1 + $0xb8] sm:$0xff]
      %v306 = vld [vmem:[%s252] sm:$0xff]
      %v307 = vld [vmem:[%s252 + $0x8] sm:$0xff]
      %v308 = vld [vmem:[%s252 + $0x10] sm:$0xff]
      %v309 = vld [vmem:[%s252 + $0x18] sm:$0xff]
      %v310 = vld [vmem:[%s252 + $0x20] sm:$0xff]
      %v311 = vld [vmem:[%s252 + $0x28] sm:$0xff]
      %v312 = vld [vmem:[%s252 + $0x30] sm:$0xff]
      %v313 = vld [vmem:[%s252 + $0x38] sm:$0xff]
      %v314 = vld [vmem:[%s252 + $0x40] sm:$0xff]
      %v315 = vld [vmem:[%s252 + $0x48] sm:$0xff]
      %v316 = vld [vmem:[%s252 + $0x50] sm:$0xff]
      %v317 = vld [vmem:[%s252 + $0x58] sm:$0xff]
      %v318 = vld [vmem:[%s252 + $0x60] sm:$0xff]
      %v319 = vld [vmem:[%s252 + $0x68] sm:$0xff]
      %v320 = vld [vmem:[%s252 + $0x70] sm:$0xff]
      %v321 = vld [vmem:[%s252 + $0x78] sm:$0xff]
      %v322 = vld [vmem:[%s252 + $0x80] sm:$0xff]
      %v323 = vld [vmem:[%s252 + $0x88] sm:$0xff]
      %v324 = vld [vmem:[%s252 + $0x90] sm:$0xff]
      %v325 = vld [vmem:[%s252 + $0x98] sm:$0xff]
      %v326 = vld [vmem:[%s252 + $0xa0] sm:$0xff]
      %v327 = vld [vmem:[%s252 + $0xa8] sm:$0xff]
      %v328 = vld [vmem:[%s252 + $0xb0] sm:$0xff]
      %v329 = vld [vmem:[%s252 + $0xb8] sm:$0xff]
      %v330 = vld [vmem:[%s252 + $0xc0] sm:$0xff]
      %v331 = vld [vmem:[%s252 + $0xc8] sm:$0xff]
      %v332 = vld [vmem:[%s252 + $0xd0] sm:$0xff]
      %v333 = vld [vmem:[%s252 + $0xd8] sm:$0xff]
      %v334 = vld [vmem:[%s252 + $0xe0] sm:$0xff]
      %v335 = vld [vmem:[%s252 + $0xe8] sm:$0xff]
      %v336 = vld [vmem:[%s252 + $0xf0] sm:$0xff]
      %v337 = vld [vmem:[%s252 + $0xf8] sm:$0xff]
      %v338 = vld [vmem:[%s252 + $0x100] sm:$0xff]
      %v339 = vld [vmem:[%s252 + $0x108] sm:$0xff]
      %v340 = vld [vmem:[%s252 + $0x110] sm:$0xff]
      %v341 = vld [vmem:[%s252 + $0x118] sm:$0xff]
      %v342 = vld [vmem:[%s252 + $0x120] sm:$0xff]
      %v343 = vld [vmem:[%s252 + $0x128] sm:$0xff]
      %v344 = vld [vmem:[%s252 + $0x130] sm:$0xff]
      %v345 = vld [vmem:[%s252 + $0x138] sm:$0xff]
      %v346 = vld [vmem:[%s252 + $0x140] sm:$0xff]
      %v347 = vld [vmem:[%s252 + $0x148] sm:$0xff]
      %v348 = vld [vmem:[%s252 + $0x150] sm:$0xff]
      %v349 = vld [vmem:[%s252 + $0x158] sm:$0xff]
      %v350 = vld [vmem:[%s252 + $0x160] sm:$0xff]
      %v351 = vld [vmem:[%s252 + $0x168] sm:$0xff]
      %v352 = vld [vmem:[%s252 + $0x170] sm:$0xff]
      %v353 = vld [vmem:[%s252 + $0x178] sm:$0xff]
      %v354 = vld [vmem:[%s252 + $0x180] sm:$0xff]
      %v355 = vld [vmem:[%s252 + $0x188] sm:$0xff]
      %v356 = vld [vmem:[%s252 + $0x190] sm:$0xff]
      %v357 = vld [vmem:[%s252 + $0x198] sm:$0xff]
      %v358 = vld [vmem:[%s252 + $0x1a0] sm:$0xff]
      %v359 = vld [vmem:[%s252 + $0x1a8] sm:$0xff]
      %v360 = vld [vmem:[%s252 + $0x1b0] sm:$0xff]
      %v361 = vld [vmem:[%s252 + $0x1b8] sm:$0xff]
      %v362 = vld [vmem:[%s252 + $0x1c0] sm:$0xff]
      %v363 = vld [vmem:[%s252 + $0x1c8] sm:$0xff]
      %v364 = vld [vmem:[%s252 + $0x1d0] sm:$0xff]
      %v365 = vld [vmem:[%s252 + $0x1d8] sm:$0xff]
      %v366 = vld [vmem:[%s252 + $0x1e0] sm:$0xff]
      %v367 = vld [vmem:[%s252 + $0x1e8] sm:$0xff]
      %v368 = vld [vmem:[%s252 + $0x1f0] sm:$0xff]
      %v369 = vld [vmem:[%s252 + $0x1f8] sm:$0xff]
      %v370 = vld [vmem:[%s252 + $0x200] sm:$0xff]
      %v371 = vld [vmem:[%s252 + $0x208] sm:$0xff]
      %v372 = vld [vmem:[%s252 + $0x210] sm:$0xff]
      %v373 = vld [vmem:[%s252 + $0x218] sm:$0xff]
      %v374 = vld [vmem:[%s252 + $0x220] sm:$0xff]
      %v375 = vld [vmem:[%s252 + $0x228] sm:$0xff]
      %v376 = vld [vmem:[%s252 + $0x230] sm:$0xff]
      %v377 = vld [vmem:[%s252 + $0x238] sm:$0xff]
      %v378 = vld [vmem:[%s252 + $0x240] sm:$0xff]
      %v379 = vld [vmem:[%s252 + $0x248] sm:$0xff]
      %v380 = vld [vmem:[%s252 + $0x250] sm:$0xff]
      %v381 = vld [vmem:[%s252 + $0x258] sm:$0xff]
      %v382 = vld [vmem:[%s252 + $0x260] sm:$0xff]
      %v383 = vld [vmem:[%s252 + $0x268] sm:$0xff]
      %v384 = vld [vmem:[%s252 + $0x270] sm:$0xff]
      %v385 = vld [vmem:[%s252 + $0x278] sm:$0xff]
      %v386 = vld [vmem:[%s252 + $0x280] sm:$0xff]
      %v387 = vld [vmem:[%s252 + $0x288] sm:$0xff]
      %v388 = vld [vmem:[%s252 + $0x290] sm:$0xff]
      %v389 = vld [vmem:[%s252 + $0x298] sm:$0xff]
      %v390 = vld [vmem:[%s252 + $0x2a0] sm:$0xff]
      %v391 = vld [vmem:[%s252 + $0x2a8] sm:$0xff]
      %v392 = vld [vmem:[%s252 + $0x2b0] sm:$0xff]
      %v393 = vld [vmem:[%s252 + $0x2b8] sm:$0xff]
      %v394 = vld [vmem:[%s252 + $0x2c0] sm:$0xff]
      %v395 = vld [vmem:[%s252 + $0x2c8] sm:$0xff]
      %v396 = vld [vmem:[%s252 + $0x2d0] sm:$0xff]
      %v397 = vld [vmem:[%s252 + $0x2d8] sm:$0xff]
      %v398 = vld [vmem:[%s252 + $0x2e0] sm:$0xff]
      %v399 = vld [vmem:[%s252 + $0x2e8] sm:$0xff]
      %v400 = vld [vmem:[%s252 + $0x2f0] sm:$0xff]
      %v401 = vld [vmem:[%s252 + $0x2f8] sm:$0xff]
      %v402 = vld [vmem:[%s252 + $0x300] sm:$0xff]
      %v403 = vld [vmem:[%s252 + $0x308] sm:$0xff]
      %v404 = vld [vmem:[%s252 + $0x310] sm:$0xff]
      %v405 = vld [vmem:[%s252 + $0x318] sm:$0xff]
      %v406 = vld [vmem:[%s252 + $0x320] sm:$0xff]
      %v407 = vld [vmem:[%s252 + $0x328] sm:$0xff]
      %v408 = vld [vmem:[%s252 + $0x330] sm:$0xff]
      %v409 = vld [vmem:[%s252 + $0x338] sm:$0xff]
      %v410 = vld [vmem:[%s252 + $0x340] sm:$0xff]
      %v411 = vld [vmem:[%s252 + $0x348] sm:$0xff]
      %v412 = vld [vmem:[%s252 + $0x350] sm:$0xff]
      %v413 = vld [vmem:[%s252 + $0x358] sm:$0xff]
      %v414 = vld [vmem:[%s252 + $0x360] sm:$0xff]
      %v415 = vld [vmem:[%s252 + $0x368] sm:$0xff]
      %v416 = vld [vmem:[%s252 + $0x370] sm:$0xff]
      %v417 = vld [vmem:[%s252 + $0x378] sm:$0xff]
      %v418 = vld [vmem:[%s252 + $0x380] sm:$0xff]
      %v419 = vld [vmem:[%s252 + $0x388] sm:$0xff]
      %v420 = vld [vmem:[%s252 + $0x390] sm:$0xff]
      %v421 = vld [vmem:[%s252 + $0x398] sm:$0xff]
      %v422 = vld [vmem:[%s252 + $0x3a0] sm:$0xff]
      %v423 = vld [vmem:[%s252 + $0x3a8] sm:$0xff]
      %v424 = vld [vmem:[%s252 + $0x3b0] sm:$0xff]
      %v425 = vld [vmem:[%s252 + $0x3b8] sm:$0xff]
      %v426 = vld [vmem:[%s252 + $0x3c0] sm:$0xff]
      %v427 = vld [vmem:[%s252 + $0x3c8] sm:$0xff]
      %v428 = vld [vmem:[%s252 + $0x3d0] sm:$0xff]
      %v429 = vld [vmem:[%s252 + $0x3d8] sm:$0xff]
      %v430 = vld [vmem:[%s252 + $0x3e0] sm:$0xff]
      %v431 = vld [vmem:[%s252 + $0x3e8] sm:$0xff]
      %v432 = vld [vmem:[%s252 + $0x3f0] sm:$0xff]
      %v433 = vld [vmem:[%s252 + $0x3f8] sm:$0xff]
      %v434 = vld [vmem:[%s252 + $0x400] sm:$0xff]
      %v435 = vld [vmem:[%s252 + $0x408] sm:$0xff]
      %v436 = vld [vmem:[%s252 + $0x410] sm:$0xff]
      %v437 = vld [vmem:[%s252 + $0x418] sm:$0xff]
      %v438 = vld [vmem:[%s252 + $0x420] sm:$0xff]
      %v439 = vld [vmem:[%s252 + $0x428] sm:$0xff]
      %v440 = vld [vmem:[%s252 + $0x430] sm:$0xff]
      %v441 = vld [vmem:[%s252 + $0x438] sm:$0xff]
      %v442 = vld [vmem:[%s252 + $0x440] sm:$0xff]
      %v443 = vld [vmem:[%s252 + $0x448] sm:$0xff]
      %v444 = vld [vmem:[%s252 + $0x450] sm:$0xff]
      %v445 = vld [vmem:[%s252 + $0x458] sm:$0xff]
      %v446 = vld [vmem:[%s252 + $0x460] sm:$0xff]
      %v447 = vld [vmem:[%s252 + $0x468] sm:$0xff]
      %v448 = vld [vmem:[%s252 + $0x470] sm:$0xff]
      %v449 = vld [vmem:[%s252 + $0x478] sm:$0xff]
      %v450 = vld [vmem:[%s252 + $0x480] sm:$0xff]
      %v451 = vld [vmem:[%s252 + $0x488] sm:$0xff]
      %v452 = vld [vmem:[%s252 + $0x490] sm:$0xff]
      %v453 = vld [vmem:[%s252 + $0x498] sm:$0xff]
      %v454 = vld [vmem:[%s252 + $0x4a0] sm:$0xff]
      %v455 = vld [vmem:[%s252 + $0x4a8] sm:$0xff]
      %v456 = vld [vmem:[%s252 + $0x4b0] sm:$0xff]
      %v457 = vld [vmem:[%s252 + $0x4b8] sm:$0xff]
      %v458 = vld [vmem:[%s252 + $0x4c0] sm:$0xff]
      %v459 = vld [vmem:[%s252 + $0x4c8] sm:$0xff]
      %v460 = vld [vmem:[%s252 + $0x4d0] sm:$0xff]
      %v461 = vld [vmem:[%s252 + $0x4d8] sm:$0xff]
      %v462 = vld [vmem:[%s252 + $0x4e0] sm:$0xff]
      %v463 = vld [vmem:[%s252 + $0x4e8] sm:$0xff]
      %v464 = vld [vmem:[%s252 + $0x4f0] sm:$0xff]
      %v465 = vld [vmem:[%s252 + $0x4f8] sm:$0xff]
      %v466 = vld [vmem:[%s252 + $0x500] sm:$0xff]
      %v467 = vld [vmem:[%s252 + $0x508] sm:$0xff]
      %v468 = vld [vmem:[%s252 + $0x510] sm:$0xff]
      %v469 = vld [vmem:[%s252 + $0x518] sm:$0xff]
      %v470 = vld [vmem:[%s252 + $0x520] sm:$0xff]
      %v471 = vld [vmem:[%s252 + $0x528] sm:$0xff]
      %v472 = vld [vmem:[%s252 + $0x530] sm:$0xff]
      %v473 = vld [vmem:[%s252 + $0x538] sm:$0xff]
      %v474 = vld [vmem:[%s252 + $0x540] sm:$0xff]
      %v475 = vld [vmem:[%s252 + $0x548] sm:$0xff]
      %v476 = vld [vmem:[%s252 + $0x550] sm:$0xff]
      %v477 = vld [vmem:[%s252 + $0x558] sm:$0xff]
      %v478 = vld [vmem:[%s252 + $0x560] sm:$0xff]
      %v479 = vld [vmem:[%s252 + $0x568] sm:$0xff]
      %v480 = vld [vmem:[%s252 + $0x570] sm:$0xff]
      %v481 = vld [vmem:[%s252 + $0x578] sm:$0xff]
      %v482 = vld [vmem:[%s252 + $0x580] sm:$0xff]
      %v483 = vld [vmem:[%s252 + $0x588] sm:$0xff]
      %v484 = vld [vmem:[%s252 + $0x590] sm:$0xff]
      %v485 = vld [vmem:[%s252 + $0x598] sm:$0xff]
      %vm486 = vcmask 261120
      %v488 = vsel %vm486, %v284, 0
      %v491 = vsel %vm486, %v287, 0
      %v494 = vsel %vm486, %v290, 0
      %v497 = vsel %vm486, %v293, 0
      %v500 = vsel %vm486, %v296, 0
      %v503 = vsel %vm486, %v299, 0
      %v506 = vsel %vm486, %v302, 0
      %v509 = vsel %vm486, %v305, 0
      %511 = vmatprep.subr.mxu0 %v382
      %512 = vmatpush1.msra.mxu0 %v381
      %513 = vmatprep.subr.mxu0 %v377
      %514 = vmatpush1.msra.mxu0 %v376
      %515 = vmatprep.subr.mxu0 %v372
      %516 = vmatpush1.msra.mxu0 %v371
      %517 = vmatprep.subr.mxu0 %v367
      %518 = vmatpush1.msra.mxu0 %v366
      %519 = vmatprep.subr.mxu0 %v362
      %520 = vmatpush1.msra.mxu0 %v361
      %521 = vmatprep.subr.mxu0 %v357
      %522 = vmatpush1.msra.mxu0 %v356
      %523 = vmatprep.subr.mxu0 %v352
      %524 = vmatpush1.msra.mxu0 %v351
      %525 = vmatprep.subr.mxu0 %v347
      %526 = vmatpush1.msra.mxu0 %v346
      %527 = vmatprep.subr.mxu0 %v342
      %528 = vmatpush1.msra.mxu0 %v341
      %529 = vmatprep.subr.mxu0 %v337
      %530 = vmatpush1.msra.mxu0 %v336
      %531 = vmatprep.subr.mxu0 %v332
      %532 = vmatpush1.msra.mxu0 %v331
      %533 = vmatprep.subr.mxu0 %v327
      %534 = vmatpush1.msra.mxu0 %v326
      %535 = vmatprep.subr.mxu0 %v322
      %536 = vmatpush1.msra.mxu0 %v321
      %537 = vmatprep.subr.mxu0 %v317
      %538 = vmatpush1.msra.mxu0 %v316
      %539 = vmatprep.subr.mxu0 %v312
      %540 = vmatpush1.msra.mxu0 %v311
      %541 = vmatprep.subr.mxu0 %v307
      %542 = vmatpush1.msra.mxu0 %v306
      %543 = vmatprep.subr.mxu0 %v462
      %544 = vmatpush2.msra.mxu0 %v461
      %545 = vmatprep.subr.mxu0 %v457
      %546 = vmatpush2.msra.mxu0 %v456
      %547 = vmatprep.subr.mxu0 %v452
      %548 = vmatpush2.msra.mxu0 %v451
      %549 = vmatprep.subr.mxu0 %v447
      %550 = vmatpush2.msra.mxu0 %v446
      %551 = vmatprep.subr.mxu0 %v442
      %552 = vmatpush2.msra.mxu0 %v441
      %553 = vmatprep.subr.mxu0 %v437
      %554 = vmatpush2.msra.mxu0 %v436
      %555 = vmatprep.subr.mxu0 %v432
      %556 = vmatpush2.msra.mxu0 %v431
      %557 = vmatprep.subr.mxu0 %v427
      %558 = vmatpush2.msra.mxu0 %v426
      %559 = vmatprep.subr.mxu0 %v422
      %560 = vmatpush2.msra.mxu0 %v421
      %561 = vmatprep.subr.mxu0 %v417
      %562 = vmatpush2.msra.mxu0 %v416
      %563 = vmatprep.subr.mxu0 %v412
      %564 = vmatpush2.msra.mxu0 %v411
      %565 = vmatprep.subr.mxu0 %v407
      %566 = vmatpush2.msra.mxu0 %v406
      %567 = vmatprep.subr.mxu0 %v402
      %568 = vmatpush2.msra.mxu0 %v401
      %569 = vmatprep.subr.mxu0 %v397
      %570 = vmatpush2.msra.mxu0 %v396
      %571 = vmatprep.subr.mxu0 %v392
      %572 = vmatpush2.msra.mxu0 %v391
      %573 = vmatprep.subr.mxu0 %v387
      %574 = vmatpush2.msra.mxu0 %v386
      %575 = vmatprep.mubr.f32.mxu0 %v283
      %576 = vmatmul.mubr.f32.gmra.mxu0 %v282
      %v577 = vpop.f32.mrf.mxu0
      %v578 = vadd.f32 0.0, %v577
      %v579 = vpop.f32.mrf.mxu0
      %v580 = vadd.f32 0.0, %v579
      %581 = vmatprep.mubr.f32.mxu0 %v286
      %582 = vmatmul.mubr.f32.gmra.mxu0 %v285
      %v583 = vpop.f32.mrf.mxu0
      %v584 = vadd.f32 0.0, %v583
      %v585 = vpop.f32.mrf.mxu0
      %v586 = vadd.f32 0.0, %v585
      %587 = vmatprep.mubr.f32.mxu0 %v289
      %588 = vmatmul.mubr.f32.gmra.mxu0 %v288
      %v589 = vpop.f32.mrf.mxu0
      %v590 = vadd.f32 0.0, %v589
      %v591 = vpop.f32.mrf.mxu0
      %v592 = vadd.f32 0.0, %v591
      %593 = vmatprep.mubr.f32.mxu0 %v292
      %594 = vmatmul.mubr.f32.gmra.mxu0 %v291
      %v595 = vpop.f32.mrf.mxu0
      %v596 = vadd.f32 0.0, %v595
      %v597 = vpop.f32.mrf.mxu0
      %v598 = vadd.f32 0.0, %v597
      %599 = vmatprep.mubr.f32.mxu0 %v295
      %600 = vmatmul.mubr.f32.gmra.mxu0 %v294
      %v601 = vpop.f32.mrf.mxu0
      %v602 = vadd.f32 0.0, %v601
      %v603 = vpop.f32.mrf.mxu0
      %v604 = vadd.f32 0.0, %v603
      %605 = vmatprep.mubr.f32.mxu0 %v298
      %606 = vmatmul.mubr.f32.gmra.mxu0 %v297
      %v607 = vpop.f32.mrf.mxu0
      %v608 = vadd.f32 0.0, %v607
      %v609 = vpop.f32.mrf.mxu0
      %v610 = vadd.f32 0.0, %v609
      %611 = vmatprep.mubr.f32.mxu0 %v301
      %612 = vmatmul.mubr.f32.gmra.mxu0 %v300
      %v613 = vpop.f32.mrf.mxu0
      %v614 = vadd.f32 0.0, %v613
      %v615 = vpop.f32.mrf.mxu0
      %v616 = vadd.f32 0.0, %v615
      %617 = vmatprep.mubr.f32.mxu0 %v304
      %618 = vmatmul.mubr.f32.gmra.mxu0 %v303
      %v619 = vpop.f32.mrf.mxu0
      %v620 = vadd.f32 0.0, %v619
      %v621 = vpop.f32.mrf.mxu0
      %v622 = vadd.f32 0.0, %v621
      %623 = vdwg.mxu0
      %624 = vmatprep.subr.mxu0 0.0
      %625 = vmatpush1.msra.mxu0 0.0
      %626 = vmatprep.subr.mxu0 0.0
      %627 = vmatpush1.msra.mxu0 0.0
      %628 = vmatprep.subr.mxu0 0.0
      %629 = vmatpush1.msra.mxu0 0.0
      %630 = vmatprep.subr.mxu0 0.0
      %631 = vmatpush1.msra.mxu0 0.0
      %632 = vmatprep.subr.mxu0 0.0
      %633 = vmatpush1.msra.mxu0 0.0
      %634 = vmatprep.subr.mxu0 0.0
      %635 = vmatpush1.msra.mxu0 0.0
      %636 = vmatprep.subr.mxu0 0.0
      %637 = vmatpush1.msra.mxu0 0.0
      %638 = vmatprep.subr.mxu0 0.0
      %639 = vmatpush1.msra.mxu0 0.0
      %640 = vmatprep.subr.mxu0 0.0
      %641 = vmatpush1.msra.mxu0 0.0
      %642 = vmatprep.subr.mxu0 0.0
      %643 = vmatpush1.msra.mxu0 0.0
      %644 = vmatprep.subr.mxu0 0.0
      %645 = vmatpush1.msra.mxu0 0.0
      %646 = vmatprep.subr.mxu0 0.0
      %647 = vmatpush1.msra.mxu0 0.0
      %648 = vmatprep.subr.mxu0 %v482
      %649 = vmatpush1.msra.mxu0 %v481
      %650 = vmatprep.subr.mxu0 %v477
      %651 = vmatpush1.msra.mxu0 %v476
      %652 = vmatprep.subr.mxu0 %v472
      %653 = vmatpush1.msra.mxu0 %v471
      %654 = vmatprep.subr.mxu0 %v467
      %655 = vmatpush1.msra.mxu0 %v466
      %656 = vmatprep.subr.mxu0 0.0
      %657 = vmatpush2.msra.mxu0 0.0
      %658 = vmatprep.subr.mxu0 0.0
      %659 = vmatpush2.msra.mxu0 0.0
      %660 = vmatprep.subr.mxu0 0.0
      %661 = vmatpush2.msra.mxu0 0.0
      %662 = vmatprep.subr.mxu0 0.0
      %663 = vmatpush2.msra.mxu0 0.0
      %664 = vmatprep.subr.mxu0 0.0
      %665 = vmatpush2.msra.mxu0 0.0
      %666 = vmatprep.subr.mxu0 0.0
      %667 = vmatpush2.msra.mxu0 0.0
      %668 = vmatprep.subr.mxu0 0.0
      %669 = vmatpush2.msra.mxu0 0.0
      %670 = vmatprep.subr.mxu0 0.0
      %671 = vmatpush2.msra.mxu0 0.0
      %672 = vmatprep.subr.mxu0 0.0
      %673 = vmatpush2.msra.mxu0 0.0
      %674 = vmatprep.subr.mxu0 0.0
      %675 = vmatpush2.msra.mxu0 0.0
      %676 = vmatprep.subr.mxu0 0.0
      %677 = vmatpush2.msra.mxu0 0.0
      %678 = vmatprep.subr.mxu0 0.0
      %679 = vmatpush2.msra.mxu0 0.0
      %680 = vmatprep.subr.mxu0 0.0
      %681 = vmatpush2.msra.mxu0 0.0
      %682 = vmatprep.subr.mxu0 0.0
      %683 = vmatpush2.msra.mxu0 0.0
      %684 = vmatprep.subr.mxu0 0.0
      %685 = vmatpush2.msra.mxu0 0.0
      %686 = vmatprep.subr.mxu0 0.0
      %687 = vmatpush2.msra.mxu0 0.0
      %688 = vmatprep.mubr.f32.mxu0 0.0
      %689 = vmatmul.mubr.f32.gmra.mxu0 %v488
      %v690 = vpop.f32.mrf.mxu0
      %v691 = vadd.f32 %v578, %v690
      %v692 = vpop.f32.mrf.mxu0
      %v693 = vadd.f32 %v580, %v692
      %694 = vmatprep.mubr.f32.mxu0 0.0
      %695 = vmatmul.mubr.f32.gmra.mxu0 %v491
      %v696 = vpop.f32.mrf.mxu0
      %v697 = vadd.f32 %v584, %v696
      %v698 = vpop.f32.mrf.mxu0
      %v699 = vadd.f32 %v586, %v698
      %700 = vmatprep.mubr.f32.mxu0 0.0
      %701 = vmatmul.mubr.f32.gmra.mxu0 %v494
      %v702 = vpop.f32.mrf.mxu0
      %v703 = vadd.f32 %v590, %v702
      %v704 = vpop.f32.mrf.mxu0
      %v705 = vadd.f32 %v592, %v704
      %706 = vmatprep.mubr.f32.mxu0 0.0
      %707 = vmatmul.mubr.f32.gmra.mxu0 %v497
      %v708 = vpop.f32.mrf.mxu0
      %v709 = vadd.f32 %v596, %v708
      %v710 = vpop.f32.mrf.mxu0
      %v711 = vadd.f32 %v598, %v710
      %712 = vmatprep.mubr.f32.mxu0 0.0
      %713 = vmatmul.mubr.f32.gmra.mxu0 %v500
      %v714 = vpop.f32.mrf.mxu0
      %v715 = vadd.f32 %v602, %v714
      %v716 = vpop.f32.mrf.mxu0
      %v717 = vadd.f32 %v604, %v716
      %718 = vmatprep.mubr.f32.mxu0 0.0
      %719 = vmatmul.mubr.f32.gmra.mxu0 %v503
      %v720 = vpop.f32.mrf.mxu0
      %v721 = vadd.f32 %v608, %v720
      %v722 = vpop.f32.mrf.mxu0
      %v723 = vadd.f32 %v610, %v722
      %724 = vmatprep.mubr.f32.mxu0 0.0
      %725 = vmatmul.mubr.f32.gmra.mxu0 %v506
      %v726 = vpop.f32.mrf.mxu0
      %v727 = vadd.f32 %v614, %v726
      %v728 = vpop.f32.mrf.mxu0
      %v729 = vadd.f32 %v616, %v728
      %730 = vmatprep.mubr.f32.mxu0 0.0
      %731 = vmatmul.mubr.f32.gmra.mxu0 %v509
      %v732 = vpop.f32.mrf.mxu0
      %v733 = vadd.f32 %v620, %v732
      %v734 = vpop.f32.mrf.mxu0
      %v735 = vadd.f32 %v622, %v734
      %736 = vdwg.mxu0
      %737 = vmatprep.subr.mxu0 %v384
      %738 = vmatpush1.msra.mxu0 %v383
      %739 = vmatprep.subr.mxu0 %v379
      %740 = vmatpush1.msra.mxu0 %v378
      %741 = vmatprep.subr.mxu0 %v374
      %742 = vmatpush1.msra.mxu0 %v373
      %743 = vmatprep.subr.mxu0 %v369
      %744 = vmatpush1.msra.mxu0 %v368
      %745 = vmatprep.subr.mxu0 %v364
      %746 = vmatpush1.msra.mxu0 %v363
      %747 = vmatprep.subr.mxu0 %v359
      %748 = vmatpush1.msra.mxu0 %v358
      %749 = vmatprep.subr.mxu0 %v354
      %750 = vmatpush1.msra.mxu0 %v353
      %751 = vmatprep.subr.mxu0 %v349
      %752 = vmatpush1.msra.mxu0 %v348
      %753 = vmatprep.subr.mxu0 %v344
      %754 = vmatpush1.msra.mxu0 %v343
      %755 = vmatprep.subr.mxu0 %v339
      %756 = vmatpush1.msra.mxu0 %v338
      %757 = vmatprep.subr.mxu0 %v334
      %758 = vmatpush1.msra.mxu0 %v333
      %759 = vmatprep.subr.mxu0 %v329
      %760 = vmatpush1.msra.mxu0 %v328
      %761 = vmatprep.subr.mxu0 %v324
      %762 = vmatpush1.msra.mxu0 %v323
      %763 = vmatprep.subr.mxu0 %v319
      %764 = vmatpush1.msra.mxu0 %v318
      %765 = vmatprep.subr.mxu0 %v314
      %766 = vmatpush1.msra.mxu0 %v313
      %767 = vmatprep.subr.mxu0 %v309
      %768 = vmatpush1.msra.mxu0 %v308
      %769 = vmatprep.subr.mxu0 %v464
      %770 = vmatpush2.msra.mxu0 %v463
      %771 = vmatprep.subr.mxu0 %v459
      %772 = vmatpush2.msra.mxu0 %v458
      %773 = vmatprep.subr.mxu0 %v454
      %774 = vmatpush2.msra.mxu0 %v453
      %775 = vmatprep.subr.mxu0 %v449
      %776 = vmatpush2.msra.mxu0 %v448
      %777 = vmatprep.subr.mxu0 %v444
      %778 = vmatpush2.msra.mxu0 %v443
      %779 = vmatprep.subr.mxu0 %v439
      %780 = vmatpush2.msra.mxu0 %v438
      %781 = vmatprep.subr.mxu0 %v434
      %782 = vmatpush2.msra.mxu0 %v433
      %783 = vmatprep.subr.mxu0 %v429
      %784 = vmatpush2.msra.mxu0 %v428
      %785 = vmatprep.subr.mxu0 %v424
      %786 = vmatpush2.msra.mxu0 %v423
      %787 = vmatprep.subr.mxu0 %v419
      %788 = vmatpush2.msra.mxu0 %v418
      %789 = vmatprep.subr.mxu0 %v414
      %790 = vmatpush2.msra.mxu0 %v413
      %791 = vmatprep.subr.mxu0 %v409
      %792 = vmatpush2.msra.mxu0 %v408
      %793 = vmatprep.subr.mxu0 %v404
      %794 = vmatpush2.msra.mxu0 %v403
      %795 = vmatprep.subr.mxu0 %v399
      %796 = vmatpush2.msra.mxu0 %v398
      %797 = vmatprep.subr.mxu0 %v394
      %798 = vmatpush2.msra.mxu0 %v393
      %799 = vmatprep.subr.mxu0 %v389
      %800 = vmatpush2.msra.mxu0 %v388
      %801 = vmatprep.mubr.f32.mxu0 %v283
      %802 = vmatmul.mubr.f32.gmra.mxu0 %v282
      %v803 = vpop.f32.mrf.mxu0
      %v804 = vadd.f32 0.0, %v803
      %v805 = vpop.f32.mrf.mxu0
      %v806 = vadd.f32 0.0, %v805
      %807 = vmatprep.mubr.f32.mxu0 %v286
      %808 = vmatmul.mubr.f32.gmra.mxu0 %v285
      %v809 = vpop.f32.mrf.mxu0
      %v810 = vadd.f32 0.0, %v809
      %v811 = vpop.f32.mrf.mxu0
      %v812 = vadd.f32 0.0, %v811
      %813 = vmatprep.mubr.f32.mxu0 %v289
      %814 = vmatmul.mubr.f32.gmra.mxu0 %v288
      %v815 = vpop.f32.mrf.mxu0
      %v816 = vadd.f32 0.0, %v815
      %v817 = vpop.f32.mrf.mxu0
      %v818 = vadd.f32 0.0, %v817
      %819 = vmatprep.mubr.f32.mxu0 %v292
      %820 = vmatmul.mubr.f32.gmra.mxu0 %v291
      %v821 = vpop.f32.mrf.mxu0
      %v822 = vadd.f32 0.0, %v821
      %v823 = vpop.f32.mrf.mxu0
      %v824 = vadd.f32 0.0, %v823
      %825 = vmatprep.mubr.f32.mxu0 %v295
      %826 = vmatmul.mubr.f32.gmra.mxu0 %v294
      %v827 = vpop.f32.mrf.mxu0
      %v828 = vadd.f32 0.0, %v827
      %v829 = vpop.f32.mrf.mxu0
      %v830 = vadd.f32 0.0, %v829
      %831 = vmatprep.mubr.f32.mxu0 %v298
      %832 = vmatmul.mubr.f32.gmra.mxu0 %v297
      %v833 = vpop.f32.mrf.mxu0
      %v834 = vadd.f32 0.0, %v833
      %v835 = vpop.f32.mrf.mxu0
      %v836 = vadd.f32 0.0, %v835
      %837 = vmatprep.mubr.f32.mxu0 %v301
      %838 = vmatmul.mubr.f32.gmra.mxu0 %v300
      %v839 = vpop.f32.mrf.mxu0
      %v840 = vadd.f32 0.0, %v839
      %v841 = vpop.f32.mrf.mxu0
      %v842 = vadd.f32 0.0, %v841
      %843 = vmatprep.mubr.f32.mxu0 %v304
      %844 = vmatmul.mubr.f32.gmra.mxu0 %v303
      %v845 = vpop.f32.mrf.mxu0
      %v846 = vadd.f32 0.0, %v845
      %v847 = vpop.f32.mrf.mxu0
      %v848 = vadd.f32 0.0, %v847
      %849 = vdwg.mxu0
      %850 = vmatprep.subr.mxu0 0.0
      %851 = vmatpush1.msra.mxu0 0.0
      %852 = vmatprep.subr.mxu0 0.0
      %853 = vmatpush1.msra.mxu0 0.0
      %854 = vmatprep.subr.mxu0 0.0
      %855 = vmatpush1.msra.mxu0 0.0
      %856 = vmatprep.subr.mxu0 0.0
      %857 = vmatpush1.msra.mxu0 0.0
      %858 = vmatprep.subr.mxu0 0.0
      %859 = vmatpush1.msra.mxu0 0.0
      %860 = vmatprep.subr.mxu0 0.0
      %861 = vmatpush1.msra.mxu0 0.0
      %862 = vmatprep.subr.mxu0 0.0
      %863 = vmatpush1.msra.mxu0 0.0
      %864 = vmatprep.subr.mxu0 0.0
      %865 = vmatpush1.msra.mxu0 0.0
      %866 = vmatprep.subr.mxu0 0.0
      %867 = vmatpush1.msra.mxu0 0.0
      %868 = vmatprep.subr.mxu0 0.0
      %869 = vmatpush1.msra.mxu0 0.0
      %870 = vmatprep.subr.mxu0 0.0
      %871 = vmatpush1.msra.mxu0 0.0
      %872 = vmatprep.subr.mxu0 0.0
      %873 = vmatpush1.msra.mxu0 0.0
      %874 = vmatprep.subr.mxu0 %v484
      %875 = vmatpush1.msra.mxu0 %v483
      %876 = vmatprep.subr.mxu0 %v479
      %877 = vmatpush1.msra.mxu0 %v478
      %878 = vmatprep.subr.mxu0 %v474
      %879 = vmatpush1.msra.mxu0 %v473
      %880 = vmatprep.subr.mxu0 %v469
      %881 = vmatpush1.msra.mxu0 %v468
      %882 = vmatprep.subr.mxu0 0.0
      %883 = vmatpush2.msra.mxu0 0.0
      %884 = vmatprep.subr.mxu0 0.0
      %885 = vmatpush2.msra.mxu0 0.0
      %886 = vmatprep.subr.mxu0 0.0
      %887 = vmatpush2.msra.mxu0 0.0
      %888 = vmatprep.subr.mxu0 0.0
      %889 = vmatpush2.msra.mxu0 0.0
      %890 = vmatprep.subr.mxu0 0.0
      %891 = vmatpush2.msra.mxu0 0.0
      %892 = vmatprep.subr.mxu0 0.0
      %893 = vmatpush2.msra.mxu0 0.0
      %894 = vmatprep.subr.mxu0 0.0
      %895 = vmatpush2.msra.mxu0 0.0
      %896 = vmatprep.subr.mxu0 0.0
      %897 = vmatpush2.msra.mxu0 0.0
      %898 = vmatprep.subr.mxu0 0.0
      %899 = vmatpush2.msra.mxu0 0.0
      %900 = vmatprep.subr.mxu0 0.0
      %901 = vmatpush2.msra.mxu0 0.0
      %902 = vmatprep.subr.mxu0 0.0
      %903 = vmatpush2.msra.mxu0 0.0
      %904 = vmatprep.subr.mxu0 0.0
      %905 = vmatpush2.msra.mxu0 0.0
      %906 = vmatprep.subr.mxu0 0.0
      %907 = vmatpush2.msra.mxu0 0.0
      %908 = vmatprep.subr.mxu0 0.0
      %909 = vmatpush2.msra.mxu0 0.0
      %910 = vmatprep.subr.mxu0 0.0
      %911 = vmatpush2.msra.mxu0 0.0
      %912 = vmatprep.subr.mxu0 0.0
      %913 = vmatpush2.msra.mxu0 0.0
      %914 = vmatprep.mubr.f32.mxu0 0.0
      %915 = vmatmul.mubr.f32.gmra.mxu0 %v488
      %v916 = vpop.f32.mrf.mxu0
      %v917 = vadd.f32 %v804, %v916
      %v918 = vpop.f32.mrf.mxu0
      %v919 = vadd.f32 %v806, %v918
      %920 = vmatprep.mubr.f32.mxu0 0.0
      %921 = vmatmul.mubr.f32.gmra.mxu0 %v491
      %v922 = vpop.f32.mrf.mxu0
      %v923 = vadd.f32 %v810, %v922
      %v924 = vpop.f32.mrf.mxu0
      %v925 = vadd.f32 %v812, %v924
      %926 = vmatprep.mubr.f32.mxu0 0.0
      %927 = vmatmul.mubr.f32.gmra.mxu0 %v494
      %v928 = vpop.f32.mrf.mxu0
      %v929 = vadd.f32 %v816, %v928
      %v930 = vpop.f32.mrf.mxu0
      %v931 = vadd.f32 %v818, %v930
      %932 = vmatprep.mubr.f32.mxu0 0.0
      %933 = vmatmul.mubr.f32.gmra.mxu0 %v497
      %v934 = vpop.f32.mrf.mxu0
      %v935 = vadd.f32 %v822, %v934
      %v936 = vpop.f32.mrf.mxu0
      %v937 = vadd.f32 %v824, %v936
      %938 = vmatprep.mubr.f32.mxu0 0.0
      %939 = vmatmul.mubr.f32.gmra.mxu0 %v500
      %v940 = vpop.f32.mrf.mxu0
      %v941 = vadd.f32 %v828, %v940
      %v942 = vpop.f32.mrf.mxu0
      %v943 = vadd.f32 %v830, %v942
      %944 = vmatprep.mubr.f32.mxu0 0.0
      %945 = vmatmul.mubr.f32.gmra.mxu0 %v503
      %v946 = vpop.f32.mrf.mxu0
      %v947 = vadd.f32 %v834, %v946
      %v948 = vpop.f32.mrf.mxu0
      %v949 = vadd.f32 %v836, %v948
      %950 = vmatprep.mubr.f32.mxu0 0.0
      %951 = vmatmul.mubr.f32.gmra.mxu0 %v506
      %v952 = vpop.f32.mrf.mxu0
      %v953 = vadd.f32 %v840, %v952
      %v954 = vpop.f32.mrf.mxu0
      %v955 = vadd.f32 %v842, %v954
      %956 = vmatprep.mubr.f32.mxu0 0.0
      %957 = vmatmul.mubr.f32.gmra.mxu0 %v509
      %v958 = vpop.f32.mrf.mxu0
      %v959 = vadd.f32 %v846, %v958
      %v960 = vpop.f32.mrf.mxu0
      %v961 = vadd.f32 %v848, %v960
      %962 = vdwg.mxu0
      %963 = vmatprep.subr.mxu0 0.0
      %964 = vmatpush1.msra.mxu0 %v385
      %965 = vmatprep.subr.mxu0 0.0
      %966 = vmatpush1.msra.mxu0 %v380
      %967 = vmatprep.subr.mxu0 0.0
      %968 = vmatpush1.msra.mxu0 %v375
      %969 = vmatprep.subr.mxu0 0.0
      %970 = vmatpush1.msra.mxu0 %v370
      %971 = vmatprep.subr.mxu0 0.0
      %972 = vmatpush1.msra.mxu0 %v365
      %973 = vmatprep.subr.mxu0 0.0
      %974 = vmatpush1.msra.mxu0 %v360
      %975 = vmatprep.subr.mxu0 0.0
      %976 = vmatpush1.msra.mxu0 %v355
      %977 = vmatprep.subr.mxu0 0.0
      %978 = vmatpush1.msra.mxu0 %v350
      %979 = vmatprep.subr.mxu0 0.0
      %980 = vmatpush1.msra.mxu0 %v345
      %981 = vmatprep.subr.mxu0 0.0
      %982 = vmatpush1.msra.mxu0 %v340
      %983 = vmatprep.subr.mxu0 0.0
      %984 = vmatpush1.msra.mxu0 %v335
      %985 = vmatprep.subr.mxu0 0.0
      %986 = vmatpush1.msra.mxu0 %v330
      %987 = vmatprep.subr.mxu0 0.0
      %988 = vmatpush1.msra.mxu0 %v325
      %989 = vmatprep.subr.mxu0 0.0
      %990 = vmatpush1.msra.mxu0 %v320
      %991 = vmatprep.subr.mxu0 0.0
      %992 = vmatpush1.msra.mxu0 %v315
      %993 = vmatprep.subr.mxu0 0.0
      %994 = vmatpush1.msra.mxu0 %v310
      %995 = vmatprep.subr.mxu0 0.0
      %996 = vmatpush2.msra.mxu0 %v465
      %997 = vmatprep.subr.mxu0 0.0
      %998 = vmatpush2.msra.mxu0 %v460
      %999 = vmatprep.subr.mxu0 0.0
      %1000 = vmatpush2.msra.mxu0 %v455
      %1001 = vmatprep.subr.mxu0 0.0
      %1002 = vmatpush2.msra.mxu0 %v450
      %1003 = vmatprep.subr.mxu0 0.0
      %1004 = vmatpush2.msra.mxu0 %v445
      %1005 = vmatprep.subr.mxu0 0.0
      %1006 = vmatpush2.msra.mxu0 %v440
      %1007 = vmatprep.subr.mxu0 0.0
      %1008 = vmatpush2.msra.mxu0 %v435
      %1009 = vmatprep.subr.mxu0 0.0
      %1010 = vmatpush2.msra.mxu0 %v430
      %1011 = vmatprep.subr.mxu0 0.0
      %1012 = vmatpush2.msra.mxu0 %v425
      %1013 = vmatprep.subr.mxu0 0.0
      %1014 = vmatpush2.msra.mxu0 %v420
      %1015 = vmatprep.subr.mxu0 0.0
      %1016 = vmatpush2.msra.mxu0 %v415
      %1017 = vmatprep.subr.mxu0 0.0
      %1018 = vmatpush2.msra.mxu0 %v410
      %1019 = vmatprep.subr.mxu0 0.0
      %1020 = vmatpush2.msra.mxu0 %v405
      %1021 = vmatprep.subr.mxu0 0.0
      %1022 = vmatpush2.msra.mxu0 %v400
      %1023 = vmatprep.subr.mxu0 0.0
      %1024 = vmatpush2.msra.mxu0 %v395
      %1025 = vmatprep.subr.mxu0 0.0
      %1026 = vmatpush2.msra.mxu0 %v390
      %1027 = vmatprep.mubr.f32.mxu0 %v283
      %1028 = vmatmul.mubr.f32.gmra.mxu0 %v282
      %v1029 = vpop.f32.mrf.mxu0
      %v1030 = vadd.f32 0.0, %v1029
      %v1031 = vpop.f32.mrf.mxu0
      %1032 = vmatprep.mubr.f32.mxu0 %v286
      %1033 = vmatmul.mubr.f32.gmra.mxu0 %v285
      %v1034 = vpop.f32.mrf.mxu0
      %v1035 = vadd.f32 0.0, %v1034
      %v1036 = vpop.f32.mrf.mxu0
      %1037 = vmatprep.mubr.f32.mxu0 %v289
      %1038 = vmatmul.mubr.f32.gmra.mxu0 %v288
      %v1039 = vpop.f32.mrf.mxu0
      %v1040 = vadd.f32 0.0, %v1039
      %v1041 = vpop.f32.mrf.mxu0
      %1042 = vmatprep.mubr.f32.mxu0 %v292
      %1043 = vmatmul.mubr.f32.gmra.mxu0 %v291
      %v1044 = vpop.f32.mrf.mxu0
      %v1045 = vadd.f32 0.0, %v1044
      %v1046 = vpop.f32.mrf.mxu0
      %1047 = vmatprep.mubr.f32.mxu0 %v295
      %1048 = vmatmul.mubr.f32.gmra.mxu0 %v294
      %v1049 = vpop.f32.mrf.mxu0
      %v1050 = vadd.f32 0.0, %v1049
      %v1051 = vpop.f32.mrf.mxu0
      %1052 = vmatprep.mubr.f32.mxu0 %v298
      %1053 = vmatmul.mubr.f32.gmra.mxu0 %v297
      %v1054 = vpop.f32.mrf.mxu0
      %v1055 = vadd.f32 0.0, %v1054
      %v1056 = vpop.f32.mrf.mxu0
      %1057 = vmatprep.mubr.f32.mxu0 %v301
      %1058 = vmatmul.mubr.f32.gmra.mxu0 %v300
      %v1059 = vpop.f32.mrf.mxu0
      %v1060 = vadd.f32 0.0, %v1059
      %v1061 = vpop.f32.mrf.mxu0
      %1062 = vmatprep.mubr.f32.mxu0 %v304
      %1063 = vmatmul.mubr.f32.gmra.mxu0 %v303
      %v1064 = vpop.f32.mrf.mxu0
      %v1065 = vadd.f32 0.0, %v1064
      %v1066 = vpop.f32.mrf.mxu0
      %1067 = vdwg.mxu0
      %1068 = vmatprep.subr.mxu0 0.0
      %1069 = vmatpush1.msra.mxu0 0.0
      %1070 = vmatprep.subr.mxu0 0.0
      %1071 = vmatpush1.msra.mxu0 0.0
      %1072 = vmatprep.subr.mxu0 0.0
      %1073 = vmatpush1.msra.mxu0 0.0
      %1074 = vmatprep.subr.mxu0 0.0
      %1075 = vmatpush1.msra.mxu0 0.0
      %1076 = vmatprep.subr.mxu0 0.0
      %1077 = vmatpush1.msra.mxu0 0.0
      %1078 = vmatprep.subr.mxu0 0.0
      %1079 = vmatpush1.msra.mxu0 0.0
      %1080 = vmatprep.subr.mxu0 0.0
      %1081 = vmatpush1.msra.mxu0 0.0
      %1082 = vmatprep.subr.mxu0 0.0
      %1083 = vmatpush1.msra.mxu0 0.0
      %1084 = vmatprep.subr.mxu0 0.0
      %1085 = vmatpush1.msra.mxu0 0.0
      %1086 = vmatprep.subr.mxu0 0.0
      %1087 = vmatpush1.msra.mxu0 0.0
      %1088 = vmatprep.subr.mxu0 0.0
      %1089 = vmatpush1.msra.mxu0 0.0
      %1090 = vmatprep.subr.mxu0 0.0
      %1091 = vmatpush1.msra.mxu0 0.0
      %1092 = vmatprep.subr.mxu0 0.0
      %1093 = vmatpush1.msra.mxu0 %v485
      %1094 = vmatprep.subr.mxu0 0.0
      %1095 = vmatpush1.msra.mxu0 %v480
      %1096 = vmatprep.subr.mxu0 0.0
      %1097 = vmatpush1.msra.mxu0 %v475
      %1098 = vmatprep.subr.mxu0 0.0
      %1099 = vmatpush1.msra.mxu0 %v470
      %1100 = vmatprep.subr.mxu0 0.0
      %1101 = vmatpush2.msra.mxu0 0.0
      %1102 = vmatprep.subr.mxu0 0.0
      %1103 = vmatpush2.msra.mxu0 0.0
      %1104 = vmatprep.subr.mxu0 0.0
      %1105 = vmatpush2.msra.mxu0 0.0
      %1106 = vmatprep.subr.mxu0 0.0
      %1107 = vmatpush2.msra.mxu0 0.0
      %1108 = vmatprep.subr.mxu0 0.0
      %1109 = vmatpush2.msra.mxu0 0.0
      %1110 = vmatprep.subr.mxu0 0.0
      %1111 = vmatpush2.msra.mxu0 0.0
      %1112 = vmatprep.subr.mxu0 0.0
      %1113 = vmatpush2.msra.mxu0 0.0
      %1114 = vmatprep.subr.mxu0 0.0
      %1115 = vmatpush2.msra.mxu0 0.0
      %1116 = vmatprep.subr.mxu0 0.0
      %1117 = vmatpush2.msra.mxu0 0.0
      %1118 = vmatprep.subr.mxu0 0.0
      %1119 = vmatpush2.msra.mxu0 0.0
      %1120 = vmatprep.subr.mxu0 0.0
      %1121 = vmatpush2.msra.mxu0 0.0
      %1122 = vmatprep.subr.mxu0 0.0
      %1123 = vmatpush2.msra.mxu0 0.0
      %1124 = vmatprep.subr.mxu0 0.0
      %1125 = vmatpush2.msra.mxu0 0.0
      %1126 = vmatprep.subr.mxu0 0.0
      %1127 = vmatpush2.msra.mxu0 0.0
      %1128 = vmatprep.subr.mxu0 0.0
      %1129 = vmatpush2.msra.mxu0 0.0
      %1130 = vmatprep.subr.mxu0 0.0
      %1131 = vmatpush2.msra.mxu0 0.0
      %1132 = vmatprep.mubr.f32.mxu0 0.0
      %1133 = vmatmul.mubr.f32.gmra.mxu0 %v488
      %v1134 = vpop.f32.mrf.mxu0
      %v1135 = vadd.f32 %v1030, %v1134
      %v1136 = vpop.f32.mrf.mxu0
      %1137 = vmatprep.mubr.f32.mxu0 0.0
      %1138 = vmatmul.mubr.f32.gmra.mxu0 %v491
      %v1139 = vpop.f32.mrf.mxu0
      %v1140 = vadd.f32 %v1035, %v1139
      %v1141 = vpop.f32.mrf.mxu0
      %1142 = vmatprep.mubr.f32.mxu0 0.0
      %1143 = vmatmul.mubr.f32.gmra.mxu0 %v494
      %v1144 = vpop.f32.mrf.mxu0
      %v1145 = vadd.f32 %v1040, %v1144
      %v1146 = vpop.f32.mrf.mxu0
      %1147 = vmatprep.mubr.f32.mxu0 0.0
      %1148 = vmatmul.mubr.f32.gmra.mxu0 %v497
      %v1149 = vpop.f32.mrf.mxu0
      %v1150 = vadd.f32 %v1045, %v1149
      %v1151 = vpop.f32.mrf.mxu0
      %1152 = vmatprep.mubr.f32.mxu0 0.0
      %1153 = vmatmul.mubr.f32.gmra.mxu0 %v500
      %v1154 = vpop.f32.mrf.mxu0
      %v1155 = vadd.f32 %v1050, %v1154
      %v1156 = vpop.f32.mrf.mxu0
      %1157 = vmatprep.mubr.f32.mxu0 0.0
      %1158 = vmatmul.mubr.f32.gmra.mxu0 %v503
      %v1159 = vpop.f32.mrf.mxu0
      %v1160 = vadd.f32 %v1055, %v1159
      %v1161 = vpop.f32.mrf.mxu0
      %1162 = vmatprep.mubr.f32.mxu0 0.0
      %1163 = vmatmul.mubr.f32.gmra.mxu0 %v506
      %v1164 = vpop.f32.mrf.mxu0
      %v1165 = vadd.f32 %v1060, %v1164
      %v1166 = vpop.f32.mrf.mxu0
      %1167 = vmatprep.mubr.f32.mxu0 0.0
      %1168 = vmatmul.mubr.f32.gmra.mxu0 %v509
      %v1169 = vpop.f32.mrf.mxu0
      %v1170 = vadd.f32 %v1065, %v1169
      %v1171 = vpop.f32.mrf.mxu0
      %1172 = vdwg.mxu0
      %1173 = vst [vmem:[%s262] sm:$0xff] %v691
      %1174 = vst [vmem:[%s262 + $0x8] sm:$0xff] %v693
      %1175 = vst [vmem:[%s262 + $0x10] sm:$0xff] %v917
      %1176 = vst [vmem:[%s262 + $0x18] sm:$0xff] %v919
      %1177 = vst [vmem:[%s262 + $0x20] sm:$0xff] %v1135
      %1178 = vst [vmem:[%s262 + $0x28] sm:$0xff] %v697
      %1179 = vst [vmem:[%s262 + $0x30] sm:$0xff] %v699
      %1180 = vst [vmem:[%s262 + $0x38] sm:$0xff] %v923
      %1181 = vst [vmem:[%s262 + $0x40] sm:$0xff] %v925
      %1182 = vst [vmem:[%s262 + $0x48] sm:$0xff] %v1140
      %1183 = vst [vmem:[%s262 + $0x50] sm:$0xff] %v703
      %1184 = vst [vmem:[%s262 + $0x58] sm:$0xff] %v705
      %1185 = vst [vmem:[%s262 + $0x60] sm:$0xff] %v929
      %1186 = vst [vmem:[%s262 + $0x68] sm:$0xff] %v931
      %1187 = vst [vmem:[%s262 + $0x70] sm:$0xff] %v1145
      %1188 = vst [vmem:[%s262 + $0x78] sm:$0xff] %v709
      %1189 = vst [vmem:[%s262 + $0x80] sm:$0xff] %v711
      %1190 = vst [vmem:[%s262 + $0x88] sm:$0xff] %v935
      %1191 = vst [vmem:[%s262 + $0x90] sm:$0xff] %v937
      %1192 = vst [vmem:[%s262 + $0x98] sm:$0xff] %v1150
      %1193 = vst [vmem:[%s262 + $0xa0] sm:$0xff] %v715
      %1194 = vst [vmem:[%s262 + $0xa8] sm:$0xff] %v717
      %1195 = vst [vmem:[%s262 + $0xb0] sm:$0xff] %v941
      %1196 = vst [vmem:[%s262 + $0xb8] sm:$0xff] %v943
      %1197 = vst [vmem:[%s262 + $0xc0] sm:$0xff] %v1155
      %1198 = vst [vmem:[%s262 + $0xc8] sm:$0xff] %v721
      %1199 = vst [vmem:[%s262 + $0xd0] sm:$0xff] %v723
      %1200 = vst [vmem:[%s262 + $0xd8] sm:$0xff] %v947
      %1201 = vst [vmem:[%s262 + $0xe0] sm:$0xff] %v949
      %1202 = vst [vmem:[%s262 + $0xe8] sm:$0xff] %v1160
      %1203 = vst [vmem:[%s262 + $0xf0] sm:$0xff] %v727
      %1204 = vst [vmem:[%s262 + $0xf8] sm:$0xff] %v729
      %1205 = vst [vmem:[%s262 + $0x100] sm:$0xff] %v953
      %1206 = vst [vmem:[%s262 + $0x108] sm:$0xff] %v955
      %1207 = vst [vmem:[%s262 + $0x110] sm:$0xff] %v1165
      %1208 = vst [vmem:[%s262 + $0x118] sm:$0xff] %v733
      %1209 = vst [vmem:[%s262 + $0x120] sm:$0xff] %v735
      %1210 = vst [vmem:[%s262 + $0x128] sm:$0xff] %v959
      %1211 = vst [vmem:[%s262 + $0x130] sm:$0xff] %v961
      %1212 = vst [vmem:[%s262 + $0x138] sm:$0xff] %v1170
      %v1213 = vadd.f32 %v691, %v693
      %v1214 = vadd.f32 %v1213, %v917
      %v1215 = vadd.f32 %v1214, %v919
      %v1216 = vadd.f32 %v1215, %v1135
      %1217 = vadd.xlane.f32.xlu0 %v1216
      %v1218 = vpop.xlane.xlu0 %1217
      %v1219 = vadd.f32 %v697, %v699
      %v1220 = vadd.f32 %v1219, %v923
      %v1221 = vadd.f32 %v1220, %v925
      %v1222 = vadd.f32 %v1221, %v1140
      %1223 = vadd.xlane.f32.xlu0 %v1222
      %v1224 = vpop.xlane.xlu0 %1223
      %v1225 = vadd.f32 %v703, %v705
      %v1226 = vadd.f32 %v1225, %v929
      %v1227 = vadd.f32 %v1226, %v931
      %v1228 = vadd.f32 %v1227, %v1145
      %1229 = vadd.xlane.f32.xlu0 %v1228
      %v1230 = vpop.xlane.xlu0 %1229
      %v1231 = vadd.f32 %v709, %v711
      %v1232 = vadd.f32 %v1231, %v935
      %v1233 = vadd.f32 %v1232, %v937
      %v1234 = vadd.f32 %v1233, %v1150
      %1235 = vadd.xlane.f32.xlu0 %v1234
      %v1236 = vpop.xlane.xlu0 %1235
      %v1237 = vadd.f32 %v715, %v717
      %v1238 = vadd.f32 %v1237, %v941
      %v1239 = vadd.f32 %v1238, %v943
      %v1240 = vadd.f32 %v1239, %v1155
      %1241 = vadd.xlane.f32.xlu0 %v1240
      %v1242 = vpop.xlane.xlu0 %1241
      %v1243 = vadd.f32 %v721, %v723
      %v1244 = vadd.f32 %v1243, %v947
      %v1245 = vadd.f32 %v1244, %v949
      %v1246 = vadd.f32 %v1245, %v1160
      %1247 = vadd.xlane.f32.xlu0 %v1246
      %v1248 = vpop.xlane.xlu0 %1247
      %v1249 = vadd.f32 %v727, %v729
      %v1250 = vadd.f32 %v1249, %v953
      %v1251 = vadd.f32 %v1250, %v955
      %v1252 = vadd.f32 %v1251, %v1165
      %1253 = vadd.xlane.f32.xlu0 %v1252
      %v1254 = vpop.xlane.xlu0 %1253
      %v1255 = vadd.f32 %v733, %v735
      %v1256 = vadd.f32 %v1255, %v959
      %v1257 = vadd.f32 %v1256, %v961
      %v1258 = vadd.f32 %v1257, %v1170
      %1259 = vadd.xlane.f32.xlu0 %v1258
      %v1260 = vpop.xlane.xlu0 %1259
      %vm1261 = vcmask 7168
      %1262 = vst.msk [vmem:[%s272] sm:$0xff] %vm1261, %v1218
      %1263 = vst.msk [vmem:[%s272 + $0x8] sm:$0xff] %vm1261, %v1224
      %1264 = vst.msk [vmem:[%s272 + $0x10] sm:$0xff] %vm1261, %v1230
      %1265 = vst.msk [vmem:[%s272 + $0x18] sm:$0xff] %vm1261, %v1236
      %1266 = vst.msk [vmem:[%s272 + $0x20] sm:$0xff] %vm1261, %v1242
      %1267 = vst.msk [vmem:[%s272 + $0x28] sm:$0xff] %vm1261, %v1248
      %1268 = vst.msk [vmem:[%s272 + $0x30] sm:$0xff] %vm1261, %v1254
      %1269 = vst.msk [vmem:[%s272 + $0x38] sm:$0xff] %vm1261, %v1260
      %v1270 = vmul.f32 %v691, %v691
      %v1271 = vmul.f32 %v693, %v693
      %v1272 = vmul.f32 %v917, %v917
      %v1273 = vmul.f32 %v919, %v919
      %v1274 = vmul.f32 %v1135, %v1135
      %v1275 = vmul.f32 %v697, %v697
      %v1276 = vmul.f32 %v699, %v699
      %v1277 = vmul.f32 %v923, %v923
      %v1278 = vmul.f32 %v925, %v925
      %v1279 = vmul.f32 %v1140, %v1140
      %v1280 = vmul.f32 %v703, %v703
      %v1281 = vmul.f32 %v705, %v705
      %v1282 = vmul.f32 %v929, %v929
      %v1283 = vmul.f32 %v931, %v931
      %v1284 = vmul.f32 %v1145, %v1145
      %v1285 = vmul.f32 %v709, %v709
      %v1286 = vmul.f32 %v711, %v711
      %v1287 = vmul.f32 %v935, %v935
      %v1288 = vmul.f32 %v937, %v937
      %v1289 = vmul.f32 %v1150, %v1150
      %v1290 = vmul.f32 %v715, %v715
      %v1291 = vmul.f32 %v717, %v717
      %v1292 = vmul.f32 %v941, %v941
      %v1293 = vmul.f32 %v943, %v943
      %v1294 = vmul.f32 %v1155, %v1155
      %v1295 = vmul.f32 %v721, %v721
      %v1296 = vmul.f32 %v723, %v723
      %v1297 = vmul.f32 %v947, %v947
      %v1298 = vmul.f32 %v949, %v949
      %v1299 = vmul.f32 %v1160, %v1160
      %v1300 = vmul.f32 %v727, %v727
      %v1301 = vmul.f32 %v729, %v729
      %v1302 = vmul.f32 %v953, %v953
      %v1303 = vmul.f32 %v955, %v955
      %v1304 = vmul.f32 %v1165, %v1165
      %v1305 = vmul.f32 %v733, %v733
      %v1306 = vmul.f32 %v735, %v735
      %v1307 = vmul.f32 %v959, %v959
      %v1308 = vmul.f32 %v961, %v961
      %v1309 = vmul.f32 %v1170, %v1170
      %v1310 = vadd.f32 %v1270, %v1271
      %v1311 = vadd.f32 %v1310, %v1272
      %v1312 = vadd.f32 %v1311, %v1273
      %v1313 = vadd.f32 %v1312, %v1274
      %1314 = vadd.xlane.f32.xlu0 %v1313
      %v1315 = vpop.xlane.xlu0 %1314
      %v1316 = vadd.f32 %v1275, %v1276
      %v1317 = vadd.f32 %v1316, %v1277
      %v1318 = vadd.f32 %v1317, %v1278
      %v1319 = vadd.f32 %v1318, %v1279
      %1320 = vadd.xlane.f32.xlu0 %v1319
      %v1321 = vpop.xlane.xlu0 %1320
      %v1322 = vadd.f32 %v1280, %v1281
      %v1323 = vadd.f32 %v1322, %v1282
      %v1324 = vadd.f32 %v1323, %v1283
      %v1325 = vadd.f32 %v1324, %v1284
      %1326 = vadd.xlane.f32.xlu0 %v1325
      %v1327 = vpop.xlane.xlu0 %1326
      %v1328 = vadd.f32 %v1285, %v1286
      %v1329 = vadd.f32 %v1328, %v1287
      %v1330 = vadd.f32 %v1329, %v1288
      %v1331 = vadd.f32 %v1330, %v1289
      %1332 = vadd.xlane.f32.xlu0 %v1331
      %v1333 = vpop.xlane.xlu0 %1332
      %v1334 = vadd.f32 %v1290, %v1291
      %v1335 = vadd.f32 %v1334, %v1292
      %v1336 = vadd.f32 %v1335, %v1293
      %v1337 = vadd.f32 %v1336, %v1294
      %1338 = vadd.xlane.f32.xlu0 %v1337
      %v1339 = vpop.xlane.xlu0 %1338
      %v1340 = vadd.f32 %v1295, %v1296
      %v1341 = vadd.f32 %v1340, %v1297
      %v1342 = vadd.f32 %v1341, %v1298
      %v1343 = vadd.f32 %v1342, %v1299
      %1344 = vadd.xlane.f32.xlu0 %v1343
      %v1345 = vpop.xlane.xlu0 %1344
      %v1346 = vadd.f32 %v1300, %v1301
      %v1347 = vadd.f32 %v1346, %v1302
      %v1348 = vadd.f32 %v1347, %v1303
      %v1349 = vadd.f32 %v1348, %v1304
      %1350 = vadd.xlane.f32.xlu0 %v1349
      %v1351 = vpop.xlane.xlu0 %1350
      %v1352 = vadd.f32 %v1305, %v1306
      %v1353 = vadd.f32 %v1352, %v1307
      %v1354 = vadd.f32 %v1353, %v1308
      %v1355 = vadd.f32 %v1354, %v1309
      %1356 = vadd.xlane.f32.xlu0 %v1355
      %v1357 = vpop.xlane.xlu0 %1356
      %1358 = vst.msk [vmem:[%s281] sm:$0xff] %vm1261, %v1315
      %1359 = vst.msk [vmem:[%s281 + $0x8] sm:$0xff] %vm1261, %v1321
      %1360 = vst.msk [vmem:[%s281 + $0x10] sm:$0xff] %vm1261, %v1327
      %1361 = vst.msk [vmem:[%s281 + $0x18] sm:$0xff] %vm1261, %v1333
      %1362 = vst.msk [vmem:[%s281 + $0x20] sm:$0xff] %vm1261, %v1339
      %1363 = vst.msk [vmem:[%s281 + $0x28] sm:$0xff] %vm1261, %v1345
      %1364 = vst.msk [vmem:[%s281 + $0x30] sm:$0xff] %vm1261, %v1351
      %1365 = vst.msk [vmem:[%s281 + $0x38] sm:$0xff] %vm1261, %v1357
      %s1366 = smul.u32 5, %s21
      %p1367 = scmp.lt.s32.totalorder %s20, 1
      %s1368 = scalar_select %p1367, %s20, 1
      %p1369 = scmp.lt.s32.totalorder %s1366, 4
      %s1370 = scalar_select %p1369, %s1366, 4
      %s1371 = smul.addr %s1368, 40
      %s1372 = sadd.s32 %s1370, %s1371
      %s1373 = smul.addr %s1372, 8
      %s1374 = scalar_lea.vmem %s2, %s1373
      %p1375 = scmp.lt.s32.totalorder %s20, 1
      %s1376 = scalar_select %p1375, %s20, 1
      %p1377 = scmp.lt.s32.totalorder %s21, 0
      %s1378 = scalar_select %p1377, %s21, 0
      %s1379 = smul.addr %s1378, 8
      %s1380 = smul.addr %s1376, 8
      %s1381 = sadd.s32 %s1379, %s1380
      %s1382 = smul.addr %s1381, 8
      %s1383 = scalar_lea.vmem %s3, %s1382
      %p1384 = scmp.lt.s32.totalorder %s20, 1
      %s1385 = scalar_select %p1384, %s20, 1
      %p1386 = scmp.lt.s32.totalorder %s21, 0
      %s1387 = scalar_select %p1386, %s21, 0
      %s1388 = smul.addr %s1387, 8
      %s1389 = smul.addr %s1385, 8
      %s1390 = sadd.s32 %s1388, %s1389
      %s1391 = smul.addr %s1390, 8
      %s1392 = scalar_lea.vmem %s4, %s1391
      // Predicated region
      $region29: #{conv1x1_batchnorm.2} parent=27 // pred_check
        %p1393 = pneg %p97
      $region30: #{conv1x1_batchnorm.2} parent=27 // pred_check_branch
        %1395 = sbr.rel (%p1393) target = $region32
      $region31: #{conv1x1_batchnorm.2} parent=27 // pred_region
        %s1396 = smul.u32 5, %s21
      $region32: #{conv1x1_batchnorm.2} parent=27 // pred_fallthru
        _
      // Predicated region
      $region33: #{conv1x1_batchnorm.2} parent=27 // pred_check
        %p1397 = pneg %p125
      $region34: #{conv1x1_batchnorm.2} parent=27 // pred_check_branch
        %1399 = sbr.rel (%p1397) target = $region36
      $region35: #{conv1x1_batchnorm.2} parent=27 // pred_region
        _
      $region36: #{conv1x1_batchnorm.2} parent=27 // pred_fallthru
        _
      // Predicated region
      $region37: #{conv1x1_batchnorm.2} parent=27 // pred_check
        %p1400 = pneg %p153
      $region38: #{conv1x1_batchnorm.2} parent=27 // pred_check_branch
        %1402 = sbr.rel (%p1400) target = $region40
      $region39: #{conv1x1_batchnorm.2} parent=27 // pred_region
        _
      $region40: #{conv1x1_batchnorm.2} parent=27 // pred_fallthru
        _
    $region28: #{conv1x1_batchnorm.2} parent=5 // pred_fallthru
      _
    %p1403 = scmp.le.s32.totalorder 2, %s11
    // Predicated region
    $region41: #{conv1x1_batchnorm.2} parent=5 // pred_check
      %p1404 = pneg %p1403
    $region42: #{conv1x1_batchnorm.2} parent=5 // pred_check_branch
      %1406 = sbr.rel (%p1404) target = $region44
    $region43: #{conv1x1_batchnorm.2} parent=5 // pred_region
      %s1407 = ssub.s32 %s11, 2
      // Predicated region
      $region45: #{conv1x1_batchnorm.2} parent=43 // pred_check
        %p1408 = pneg %p103
      $region46: #{conv1x1_batchnorm.2} parent=43 // pred_check_branch
        %1410 = sbr.rel (%p1408) target = $region48
      $region47: #{conv1x1_batchnorm.2} parent=43 // pred_region
        %s1411 = smul.u32 5, %s23
        %p1412 = scmp.lt.s32.totalorder %s22, 1
        %s1413 = scalar_select %p1412, %s22, 1
        %p1414 = scmp.lt.s32.totalorder %s1411, 4
        %s1415 = scalar_select %p1414, %s1411, 4
        %s1416 = smul.addr %s1413, 40
        %s1417 = sadd.s32 %s1415, %s1416
        %s1418 = smul.addr %s1417, 8
        %s1419 = scalar_lea.vmem %s2, %s1418
      $region48: #{conv1x1_batchnorm.2} parent=43 // pred_fallthru
        _
      // Predicated region
      $region49: #{conv1x1_batchnorm.2} parent=43 // pred_check
        %p1420 = pneg %p131
      $region50: #{conv1x1_batchnorm.2} parent=43 // pred_check_branch
        %1422 = sbr.rel (%p1420) target = $region52
      $region51: #{conv1x1_batchnorm.2} parent=43 // pred_region
        %p1423 = scmp.lt.s32.totalorder %s22, 1
        %s1424 = scalar_select %p1423, %s22, 1
        %p1425 = scmp.lt.s32.totalorder %s23, 0
        %s1426 = scalar_select %p1425, %s23, 0
        %s1427 = smul.addr %s1426, 8
        %s1428 = smul.addr %s1424, 8
        %s1429 = sadd.s32 %s1427, %s1428
        %s1430 = smul.addr %s1429, 8
        %s1431 = scalar_lea.vmem %s3, %s1430
      $region52: #{conv1x1_batchnorm.2} parent=43 // pred_fallthru
        _
      // Predicated region
      $region53: #{conv1x1_batchnorm.2} parent=43 // pred_check
        %p1432 = pneg %p159
      $region54: #{conv1x1_batchnorm.2} parent=43 // pred_check_branch
        %1434 = sbr.rel (%p1432) target = $region56
      $region55: #{conv1x1_batchnorm.2} parent=43 // pred_region
        %p1435 = scmp.lt.s32.totalorder %s22, 1
        %s1436 = scalar_select %p1435, %s22, 1
        %p1437 = scmp.lt.s32.totalorder %s23, 0
        %s1438 = scalar_select %p1437, %s23, 0
        %s1439 = smul.addr %s1438, 8
        %s1440 = smul.addr %s1436, 8
        %s1441 = sadd.s32 %s1439, %s1440
        %s1442 = smul.addr %s1441, 8
        %s1443 = scalar_lea.vmem %s4, %s1442
      $region56: #{conv1x1_batchnorm.2} parent=43 // pred_fallthru
        _
    $region44: #{conv1x1_batchnorm.2} parent=5 // pred_fallthru
      _
  $region6: #{conv1x1_batchnorm.2} parent=0 // loop_footer
    %s15 = sadd.s32 1, %s11
  $region7: #{conv1x1_batchnorm.2} parent=0 // loop_footer_branch
    %10 = sbr.rel target = $region3
  $region8: #{conv1x1_batchnorm.2} parent=0 // loop_exit
    _

</llo_original>
